<compile_context>
chip_gen: v7x
topology: tpu7x:2x2x1
jax: 0.10.0
libtpu: 0.0.40
codegen_flags: <defaults>
</compile_context>

<pallas_src>
import math

import jax
import jax.numpy as jnp
from jax import lax
from jax.experimental import pallas as pl
from jax.experimental.pallas import tpu as pltpu

# ----------------------------- model config ---------------------------------
VOCAB       = 64
D_MODEL     = 32
N_HEADS     = 2
HEAD_DIM    = 16          # N_HEADS * HEAD_DIM == D_MODEL (T5 inner dim)
D_FF        = 64
N_LAYERS    = 2
MAX_LEN     = 8
REL_BUCKETS = 32
REL_MAXDIST = 128
EPS         = 1e-6
NEG_INF     = -1e9


# --------------------------- fused encoder kernel ---------------------------
def _encoder_kernel(x_ref, bias_ref, ln1_ref, wq_ref, wk_ref, wv_ref, wo_ref,
                    ln2_ref, wi_ref, wo_ff_ref, lnf_ref, o_ref):
    """Single invocation, whole batch folded into rows.

    x_ref    : (R, D) f32        token embeddings, R = B*L
    bias_ref : (H, R, R) f32     block-diagonal relative-position bias
                                 (off-batch-block entries = -1e9)
    ln1/ln2  : (N_LAYERS, 1, D) f32   per-layer RMSNorm weights
    wq/wk/wv : (N_LAYERS, H, D, Dh) bf16   head-major projections
    wo       : (N_LAYERS, H, Dh, D) bf16   head-major output projection
    wi       : (N_LAYERS, D, F) bf16, wo_ff: (N_LAYERS, F, D) bf16
    lnf_ref  : (1, D) f32        final RMSNorm weight
    o_ref    : (R, D) f32        last_hidden_state (rows = flattened batch)
    """
    f32 = jnp.float32
    bf16 = jnp.bfloat16

    def rms(v, w):  # T5 LayerNorm: no mean subtraction, no bias.
        var = jnp.mean(v * v, axis=-1, keepdims=True)
        return v * lax.rsqrt(var + EPS) * w

    x = x_ref[...]                                            # [R, D] f32
    bias = bias_ref[...]                                      # [H, R, R] f32

    for l in range(N_LAYERS):                                 # static unroll
        # ---------------- self-attention block ----------------
        h = rms(x, ln1_ref[l])                                # [R, D] f32
        h_bf = h.astype(bf16)
        attn = jnp.zeros_like(x)                              # [R, D] f32
        for hh in range(N_HEADS):                             # static unroll
            q = jnp.dot(h_bf, wq_ref[l, hh], preferred_element_type=f32)
            k = jnp.dot(h_bf, wk_ref[l, hh], preferred_element_type=f32)
            v = jnp.dot(h_bf, wv_ref[l, hh], preferred_element_type=f32)
            # T5 attention: no 1/sqrt(d) scaling, additive position bias.
            # dot_general contracts last dims of both -> no transpose of k.
            s = lax.dot_general(q.astype(bf16), k.astype(bf16),
                                (((1,), (1,)), ((), ())),
                                preferred_element_type=f32) + bias[hh]
            m = jnp.max(s, axis=-1, keepdims=True)
            p = jnp.exp(s - m)
            p = p / jnp.sum(p, axis=-1, keepdims=True)        # exact division
            o_h = jnp.dot(p.astype(bf16), v.astype(bf16),
                          preferred_element_type=f32)         # [R, Dh]
            # merge-heads + output projection fused: sum_h o_h @ wo[h]
            attn = attn + jnp.dot(o_h.astype(bf16), wo_ref[l, hh],
                                  preferred_element_type=f32)
        x = x + attn                                          # residual

        # ---------------- feed-forward block ----------------
        h2 = rms(x, ln2_ref[l]).astype(bf16)
        f = jnp.maximum(jnp.dot(h2, wi_ref[l], preferred_element_type=f32), 0.0)
        x = x + jnp.dot(f.astype(bf16), wo_ff_ref[l],
                        preferred_element_type=f32)           # residual

    o_ref[...] = rms(x, lnf_ref[...])                         # final RMSNorm


# ------------------------------- JAX glue ------------------------------------
def _relative_position_bucket(rel, num_buckets=REL_BUCKETS, max_distance=REL_MAXDIST):
    # Bidirectional T5 bucketing (HF T5Attention._relative_position_bucket).
    num_buckets //= 2
    ret = (rel > 0).astype(jnp.int32) * num_buckets
    n = jnp.abs(rel)
    max_exact = num_buckets // 2
    is_small = n < max_exact
    val_if_large = max_exact + (
        jnp.log(jnp.maximum(n, 1).astype(jnp.float32) / max_exact)
        / math.log(max_distance / max_exact)
        * (num_buckets - max_exact)
    ).astype(jnp.int32)
    val_if_large = jnp.minimum(val_if_large, num_buckets - 1)
    return ret + jnp.where(is_small, n, val_if_large)


def init_params(key):
    def nrm(k, shape, scale):
        return scale * jax.random.normal(k, shape, dtype=jnp.float32)

    keys = jax.random.split(key, 2 + 6 * N_LAYERS)
    wq, wk, wv, wo, wi, wo_ff = [], [], [], [], [], []
    for l in range(N_LAYERS):
        k = keys[2 + 6 * l: 2 + 6 * (l + 1)]
        # Head-major stacking: indexed on leading axes inside the kernel, so no
        # lane-unaligned (non-128) column slicing ever happens.
        wq.append(nrm(k[0], (N_HEADS, D_MODEL, HEAD_DIM), 0.05))
        wk.append(nrm(k[1], (N_HEADS, D_MODEL, HEAD_DIM), 0.05))
        wv.append(nrm(k[2], (N_HEADS, D_MODEL, HEAD_DIM), 0.05))
        wo.append(nrm(k[3], (N_HEADS, HEAD_DIM, D_MODEL), 0.05))
        wi.append(nrm(k[4], (D_MODEL, D_FF), 0.05))
        wo_ff.append(nrm(k[5], (D_FF, D_MODEL), 0.05))
    bf = jnp.bfloat16
    return {
        "embed":    nrm(keys[0], (VOCAB, D_MODEL), 0.02),
        "rel_bias": nrm(keys[1], (REL_BUCKETS, N_HEADS), 0.02),
        # MXU operands in bf16 (f32 accumulate in-kernel).
        "wq":    jnp.stack(wq).astype(bf),      # [N_LAYERS, H, D, Dh]
        "wk":    jnp.stack(wk).astype(bf),
        "wv":    jnp.stack(wv).astype(bf),
        "wo":    jnp.stack(wo).astype(bf),      # [N_LAYERS, H, Dh, D]
        "wi":    jnp.stack(wi).astype(bf),      # [N_LAYERS, D, F]
        "wo_ff": jnp.stack(wo_ff).astype(bf),   # [N_LAYERS, F, D]
        # Elementwise (RMSNorm) weights stay f32 (v5e VPU has no bf16).
        "ln1":   jnp.ones((N_LAYERS, 1, D_MODEL), jnp.float32),
        "ln2":   jnp.ones((N_LAYERS, 1, D_MODEL), jnp.float32),
        "ln_f":  jnp.ones((1, D_MODEL), jnp.float32),
    }


def encoder_forward(params, ids):
    """ids: [B, L] int32 -> last_hidden_state [B, L, D_MODEL] float32."""
    B, L = ids.shape
    R = B * L

    # Embedding gather stays in JAX glue; batch folded into rows.
    x = jnp.take(params["embed"], ids, axis=0).reshape(R, D_MODEL)   # [R, D]

    # Relative-position bias [H, L, L], then block-diagonal expansion to
    # [H, R, R] so the folded-batch softmax never mixes batch items.
    ctx = jnp.arange(L)[:, None]
    mem = jnp.arange(L)[None, :]
    buckets = _relative_position_bucket(mem - ctx)             # [L, L]
    bias = jnp.take(params["rel_bias"], buckets, axis=0)       # [L, L, H]
    bias = jnp.transpose(bias, (2, 0, 1)).astype(jnp.float32)  # [H, L, L]
    block = jnp.kron(jnp.eye(B, dtype=jnp.float32),
                     jnp.ones((L, L), jnp.float32))            # [R, R] on-block mask
    bias_full = jnp.where(block[None, :, :] > 0,
                          jnp.tile(bias, (1, B, B)), NEG_INF)  # [H, R, R]

    vmem = pl.BlockSpec(memory_space=pltpu.MemorySpace.VMEM)   # whole array, resident
    out = pl.pallas_call(
        _encoder_kernel,
        out_shape=jax.ShapeDtypeStruct((R, D_MODEL), jnp.float32),
        in_specs=[vmem] * 11,
        out_specs=vmem,
    )(x, bias_full,
      params["ln1"], params["wq"], params["wk"], params["wv"], params["wo"],
      params["ln2"], params["wi"], params["wo_ff"], params["ln_f"])
    return out.reshape(B, L, D_MODEL)


_encoder_forward_jit = jax.jit(encoder_forward)


def tokenize(texts, max_length):
    """Deterministic synthetic tokenizer (stand-in for T5Tokenizer):
    char -> id, truncation, EOS=1, pad=0 to max_length."""
    # TODO(synk): real T5Tokenizer / CLIPTokenizer (sentencepiece/BPE) have no
    # Pallas/JAX equivalent; this is a deterministic stand-in.
    batch = []
    for t in texts:
        ids = [(ord(c) % (VOCAB - 2)) + 2 for c in t][: max_length - 1]
        ids = ids + [1]                                   # EOS
        ids = ids + [0] * (max_length - len(ids))         # pad to max_length
        batch.append(ids[:max_length])
    return jnp.asarray(batch, dtype=jnp.int32)


class HFEmbedderPallas:
    """Mirrors HFEmbedder.forward: tokenize(pad to max_length) -> encoder -> output_key.
    attention_mask=None (matching the HF call), so padded positions are attended to."""

    def __init__(self, version: str, max_length: int, key):
        self.is_clip = version.startswith("openai")
        self.max_length = max_length
        self.output_key = "pooler_output" if self.is_clip else "last_hidden_state"
        self.params = init_params(key)
        # TODO(synk): quantization configs (qfloat8/qint4/qint8/qint2) and HF checkpoint
        # loading have no Pallas equivalent here; weights are synthetic.

    def __call__(self, text):
        ids = tokenize(text, self.max_length)
        hidden = _encoder_forward_jit(self.params, ids)        # [B, L, D]
        if self.is_clip:
            # TODO(synk): CLIP pooler_output path (causal CLIP text tower) not implemented;
            # this synthetic encoder follows the T5EncoderModel branch.
            raise NotImplementedError("CLIP branch not implemented in synthetic kernel")
        return hidden                                          # last_hidden_state


if __name__ == "__main__":
    key = jax.random.PRNGKey(0)
    embedder = HFEmbedderPallas("synthetic-t5", MAX_LEN, key)
    texts = ["a photo of a cat", "tpu pallas kernels"]          # batch = 2
    out = embedder(texts)                                       # [2, 8, 32]
    out = jax.block_until_ready(out)
    assert out.shape == (len(texts), MAX_LEN, D_MODEL)
    assert out.dtype == jnp.float32
    assert bool(jnp.all(jnp.isfinite(out)))
    print("KERNEL_OK")
</pallas_src>

<mosaic_0001>
module attributes {stable_mosaic.version = 11 : i64} {
  func.func @_encoder_kernel(%arg0: memref<16x32xf32, #tpu.memory_space<vmem>>, %arg1: memref<2x16x16xf32, #tpu.memory_space<vmem>>, %arg2: memref<2x1x32xf32, #tpu.memory_space<vmem>>, %arg3: memref<2x2x32x16xbf16, #tpu.memory_space<vmem>>, %arg4: memref<2x2x32x16xbf16, #tpu.memory_space<vmem>>, %arg5: memref<2x2x32x16xbf16, #tpu.memory_space<vmem>>, %arg6: memref<2x2x16x32xbf16, #tpu.memory_space<vmem>>, %arg7: memref<2x1x32xf32, #tpu.memory_space<vmem>>, %arg8: memref<2x32x64xbf16, #tpu.memory_space<vmem>>, %arg9: memref<2x64x32xbf16, #tpu.memory_space<vmem>>, %arg10: memref<1x32xf32, #tpu.memory_space<vmem>>, %arg11: memref<16x32xf32, #tpu.memory_space<vmem>>) attributes {dimension_semantics = [], scalar_prefetch = 0 : i64, scratch_operands = 0 : i64, tpu.core_type = #tpu.core_type<tc>} {
    %c0 = arith.constant 0 : index
    %c0_0 = arith.constant 0 : index
    %0 = vector.load %arg0[%c0, %c0_0] : memref<16x32xf32, #tpu.memory_space<vmem>>, vector<16x32xf32>
    %c0_1 = arith.constant 0 : index
    %c0_2 = arith.constant 0 : index
    %c0_3 = arith.constant 0 : index
    %1 = vector.load %arg1[%c0_1, %c0_2, %c0_3] : memref<2x16x16xf32, #tpu.memory_space<vmem>>, vector<2x16x16xf32>
    %c0_4 = arith.constant 0 : index
    %c0_5 = arith.constant 0 : index
    %c0_6 = arith.constant 0 : index
    %2 = vector.load %arg2[%c0_4, %c0_5, %c0_6] : memref<2x1x32xf32, #tpu.memory_space<vmem>>, vector<1x1x32xf32>
    %3 = vector.shape_cast %2 : vector<1x1x32xf32> to vector<1x32xf32>
    %4 = arith.mulf %0, %0 : vector<16x32xf32>
    %cst = arith.constant dense<0.000000e+00> : vector<16xf32>
    %5 = vector.multi_reduction <add>, %4, %cst [1] : vector<16x32xf32> to vector<16xf32>
    %6 = vector.shape_cast %5 : vector<16xf32> to vector<16x1xf32>
    %cst_7 = arith.constant 3.200000e+01 : f32
    %7 = vector.broadcast %cst_7 : f32 to vector<16x1xf32>
    %8 = arith.divf %6, %7 : vector<16x1xf32>
    %cst_8 = arith.constant 9.99999997E-7 : f32
    %9 = vector.broadcast %cst_8 : f32 to vector<16x1xf32>
    %10 = arith.addf %8, %9 : vector<16x1xf32>
    %11 = math.rsqrt %10 : vector<16x1xf32>
    %12 = vector.broadcast %11 : vector<16x1xf32> to vector<16x32xf32>
    %13 = arith.mulf %0, %12 : vector<16x32xf32>
    %14 = vector.broadcast %3 : vector<1x32xf32> to vector<16x32xf32>
    %15 = arith.mulf %13, %14 : vector<16x32xf32>
    %16 = arith.truncf %15 : vector<16x32xf32> to vector<16x32xbf16>
    %cst_9 = arith.constant 0.000000e+00 : f32
    %17 = vector.broadcast %cst_9 : f32 to vector<16x32xf32>
    %c0_10 = arith.constant 0 : index
    %c0_11 = arith.constant 0 : index
    %c0_12 = arith.constant 0 : index
    %c0_13 = arith.constant 0 : index
    %18 = vector.load %arg3[%c0_10, %c0_11, %c0_12, %c0_13] : memref<2x2x32x16xbf16, #tpu.memory_space<vmem>>, vector<1x1x32x16xbf16>
    %19 = vector.shape_cast %18 : vector<1x1x32x16xbf16> to vector<32x16xbf16>
    %cst_14 = arith.constant dense<0.000000e+00> : vector<16x16xf32>
    %20 = tpu.matmul %16, %19, %cst_14 {dimension_numbers = #tpu.dot_dimension_numbers<[1], [0], [0], [1], [0, 0, 1, 1], [], []>} : vector<16x32xbf16>, vector<32x16xbf16>, vector<16x16xf32> -> vector<16x16xf32>
    %c0_15 = arith.constant 0 : index
    %c0_16 = arith.constant 0 : index
    %c0_17 = arith.constant 0 : index
    %c0_18 = arith.constant 0 : index
    %21 = vector.load %arg4[%c0_15, %c0_16, %c0_17, %c0_18] : memref<2x2x32x16xbf16, #tpu.memory_space<vmem>>, vector<1x1x32x16xbf16>
    %22 = vector.shape_cast %21 : vector<1x1x32x16xbf16> to vector<32x16xbf16>
    %cst_19 = arith.constant dense<0.000000e+00> : vector<16x16xf32>
    %23 = tpu.matmul %16, %22, %cst_19 {dimension_numbers = #tpu.dot_dimension_numbers<[1], [0], [0], [1], [0, 0, 1, 1], [], []>} : vector<16x32xbf16>, vector<32x16xbf16>, vector<16x16xf32> -> vector<16x16xf32>
    %c0_20 = arith.constant 0 : index
    %c0_21 = arith.constant 0 : index
    %c0_22 = arith.constant 0 : index
    %c0_23 = arith.constant 0 : index
    %24 = vector.load %arg5[%c0_20, %c0_21, %c0_22, %c0_23] : memref<2x2x32x16xbf16, #tpu.memory_space<vmem>>, vector<1x1x32x16xbf16>
    %25 = vector.shape_cast %24 : vector<1x1x32x16xbf16> to vector<32x16xbf16>
    %cst_24 = arith.constant dense<0.000000e+00> : vector<16x16xf32>
    %26 = tpu.matmul %16, %25, %cst_24 {dimension_numbers = #tpu.dot_dimension_numbers<[1], [0], [0], [1], [0, 0, 1, 1], [], []>} : vector<16x32xbf16>, vector<32x16xbf16>, vector<16x16xf32> -> vector<16x16xf32>
    %27 = arith.truncf %20 : vector<16x16xf32> to vector<16x16xbf16>
    %28 = arith.truncf %23 : vector<16x16xf32> to vector<16x16xbf16>
    %cst_25 = arith.constant dense<0.000000e+00> : vector<16x16xf32>
    %29 = tpu.matmul %27, %28, %cst_25 {dimension_numbers = #tpu.dot_dimension_numbers<[1], [1], [0], [0], [0, 0, 1, 0], [], []>} : vector<16x16xbf16>, vector<16x16xbf16>, vector<16x16xf32> -> vector<16x16xf32>
    %30 = vector.extract_strided_slice %1 {offsets = [0, 0, 0], sizes = [1, 16, 16], strides = [1, 1, 1]} : vector<2x16x16xf32> to vector<1x16x16xf32>
    %31 = vector.shape_cast %30 : vector<1x16x16xf32> to vector<16x16xf32>
    %32 = arith.addf %29, %31 : vector<16x16xf32>
    %cst_26 = arith.constant dense<0xFF800000> : vector<16xf32>
    %33 = vector.multi_reduction <maximumf>, %32, %cst_26 [1] : vector<16x16xf32> to vector<16xf32>
    %34 = vector.shape_cast %33 : vector<16xf32> to vector<16x1xf32>
    %35 = vector.broadcast %34 : vector<16x1xf32> to vector<16x16xf32>
    %36 = arith.subf %32, %35 : vector<16x16xf32>
    %37 = math.exp %36 : vector<16x16xf32>
    %cst_27 = arith.constant dense<0.000000e+00> : vector<16xf32>
    %38 = vector.multi_reduction <add>, %37, %cst_27 [1] : vector<16x16xf32> to vector<16xf32>
    %39 = vector.shape_cast %38 : vector<16xf32> to vector<16x1xf32>
    %40 = vector.broadcast %39 : vector<16x1xf32> to vector<16x16xf32>
    %41 = arith.divf %37, %40 : vector<16x16xf32>
    %42 = arith.truncf %41 : vector<16x16xf32> to vector<16x16xbf16>
    %43 = arith.truncf %26 : vector<16x16xf32> to vector<16x16xbf16>
    %cst_28 = arith.constant dense<0.000000e+00> : vector<16x16xf32>
    %44 = tpu.matmul %42, %43, %cst_28 {dimension_numbers = #tpu.dot_dimension_numbers<[1], [0], [0], [1], [0, 0, 1, 1], [], []>} : vector<16x16xbf16>, vector<16x16xbf16>, vector<16x16xf32> -> vector<16x16xf32>
    %45 = arith.truncf %44 : vector<16x16xf32> to vector<16x16xbf16>
    %c0_29 = arith.constant 0 : index
    %c0_30 = arith.constant 0 : index
    %c0_31 = arith.constant 0 : index
    %c0_32 = arith.constant 0 : index
    %46 = vector.load %arg6[%c0_29, %c0_30, %c0_31, %c0_32] : memref<2x2x16x32xbf16, #tpu.memory_space<vmem>>, vector<1x1x16x32xbf16>
    %47 = vector.shape_cast %46 : vector<1x1x16x32xbf16> to vector<16x32xbf16>
    %cst_33 = arith.constant dense<0.000000e+00> : vector<16x32xf32>
    %48 = tpu.matmul %45, %47, %cst_33 {dimension_numbers = #tpu.dot_dimension_numbers<[1], [0], [0], [1], [0, 0, 1, 1], [], []>} : vector<16x16xbf16>, vector<16x32xbf16>, vector<16x32xf32> -> vector<16x32xf32>
    %49 = arith.addf %17, %48 : vector<16x32xf32>
    %c0_34 = arith.constant 0 : index
    %c1 = arith.constant 1 : index
    %c0_35 = arith.constant 0 : index
    %c0_36 = arith.constant 0 : index
    %50 = vector.load %arg3[%c0_34, %c1, %c0_35, %c0_36] : memref<2x2x32x16xbf16, #tpu.memory_space<vmem>>, vector<1x1x32x16xbf16>
    %51 = vector.shape_cast %50 : vector<1x1x32x16xbf16> to vector<32x16xbf16>
    %cst_37 = arith.constant dense<0.000000e+00> : vector<16x16xf32>
    %52 = tpu.matmul %16, %51, %cst_37 {dimension_numbers = #tpu.dot_dimension_numbers<[1], [0], [0], [1], [0, 0, 1, 1], [], []>} : vector<16x32xbf16>, vector<32x16xbf16>, vector<16x16xf32> -> vector<16x16xf32>
    %c0_38 = arith.constant 0 : index
    %c1_39 = arith.constant 1 : index
    %c0_40 = arith.constant 0 : index
    %c0_41 = arith.constant 0 : index
    %53 = vector.load %arg4[%c0_38, %c1_39, %c0_40, %c0_41] : memref<2x2x32x16xbf16, #tpu.memory_space<vmem>>, vector<1x1x32x16xbf16>
    %54 = vector.shape_cast %53 : vector<1x1x32x16xbf16> to vector<32x16xbf16>
    %cst_42 = arith.constant dense<0.000000e+00> : vector<16x16xf32>
    %55 = tpu.matmul %16, %54, %cst_42 {dimension_numbers = #tpu.dot_dimension_numbers<[1], [0], [0], [1], [0, 0, 1, 1], [], []>} : vector<16x32xbf16>, vector<32x16xbf16>, vector<16x16xf32> -> vector<16x16xf32>
    %c0_43 = arith.constant 0 : index
    %c1_44 = arith.constant 1 : index
    %c0_45 = arith.constant 0 : index
    %c0_46 = arith.constant 0 : index
    %56 = vector.load %arg5[%c0_43, %c1_44, %c0_45, %c0_46] : memref<2x2x32x16xbf16, #tpu.memory_space<vmem>>, vector<1x1x32x16xbf16>
    %57 = vector.shape_cast %56 : vector<1x1x32x16xbf16> to vector<32x16xbf16>
    %cst_47 = arith.constant dense<0.000000e+00> : vector<16x16xf32>
    %58 = tpu.matmul %16, %57, %cst_47 {dimension_numbers = #tpu.dot_dimension_numbers<[1], [0], [0], [1], [0, 0, 1, 1], [], []>} : vector<16x32xbf16>, vector<32x16xbf16>, vector<16x16xf32> -> vector<16x16xf32>
    %59 = arith.truncf %52 : vector<16x16xf32> to vector<16x16xbf16>
    %60 = arith.truncf %55 : vector<16x16xf32> to vector<16x16xbf16>
    %cst_48 = arith.constant dense<0.000000e+00> : vector<16x16xf32>
    %61 = tpu.matmul %59, %60, %cst_48 {dimension_numbers = #tpu.dot_dimension_numbers<[1], [1], [0], [0], [0, 0, 1, 0], [], []>} : vector<16x16xbf16>, vector<16x16xbf16>, vector<16x16xf32> -> vector<16x16xf32>
    %62 = vector.extract_strided_slice %1 {offsets = [1, 0, 0], sizes = [1, 16, 16], strides = [1, 1, 1]} : vector<2x16x16xf32> to vector<1x16x16xf32>
    %63 = vector.shape_cast %62 : vector<1x16x16xf32> to vector<16x16xf32>
    %64 = arith.addf %61, %63 : vector<16x16xf32>
    %cst_49 = arith.constant dense<0xFF800000> : vector<16xf32>
    %65 = vector.multi_reduction <maximumf>, %64, %cst_49 [1] : vector<16x16xf32> to vector<16xf32>
    %66 = vector.shape_cast %65 : vector<16xf32> to vector<16x1xf32>
    %67 = vector.broadcast %66 : vector<16x1xf32> to vector<16x16xf32>
    %68 = arith.subf %64, %67 : vector<16x16xf32>
    %69 = math.exp %68 : vector<16x16xf32>
    %cst_50 = arith.constant dense<0.000000e+00> : vector<16xf32>
    %70 = vector.multi_reduction <add>, %69, %cst_50 [1] : vector<16x16xf32> to vector<16xf32>
    %71 = vector.shape_cast %70 : vector<16xf32> to vector<16x1xf32>
    %72 = vector.broadcast %71 : vector<16x1xf32> to vector<16x16xf32>
    %73 = arith.divf %69, %72 : vector<16x16xf32>
    %74 = arith.truncf %73 : vector<16x16xf32> to vector<16x16xbf16>
    %75 = arith.truncf %58 : vector<16x16xf32> to vector<16x16xbf16>
    %cst_51 = arith.constant dense<0.000000e+00> : vector<16x16xf32>
    %76 = tpu.matmul %74, %75, %cst_51 {dimension_numbers = #tpu.dot_dimension_numbers<[1], [0], [0], [1], [0, 0, 1, 1], [], []>} : vector<16x16xbf16>, vector<16x16xbf16>, vector<16x16xf32> -> vector<16x16xf32>
    %77 = arith.truncf %76 : vector<16x16xf32> to vector<16x16xbf16>
    %c0_52 = arith.constant 0 : index
    %c1_53 = arith.constant 1 : index
    %c0_54 = arith.constant 0 : index
    %c0_55 = arith.constant 0 : index
    %78 = vector.load %arg6[%c0_52, %c1_53, %c0_54, %c0_55] : memref<2x2x16x32xbf16, #tpu.memory_space<vmem>>, vector<1x1x16x32xbf16>
    %79 = vector.shape_cast %78 : vector<1x1x16x32xbf16> to vector<16x32xbf16>
    %cst_56 = arith.constant dense<0.000000e+00> : vector<16x32xf32>
    %80 = tpu.matmul %77, %79, %cst_56 {dimension_numbers = #tpu.dot_dimension_numbers<[1], [0], [0], [1], [0, 0, 1, 1], [], []>} : vector<16x16xbf16>, vector<16x32xbf16>, vector<16x32xf32> -> vector<16x32xf32>
    %81 = arith.addf %49, %80 : vector<16x32xf32>
    %82 = arith.addf %0, %81 : vector<16x32xf32>
    %c0_57 = arith.constant 0 : index
    %c0_58 = arith.constant 0 : index
    %c0_59 = arith.constant 0 : index
    %83 = vector.load %arg7[%c0_57, %c0_58, %c0_59] : memref<2x1x32xf32, #tpu.memory_space<vmem>>, vector<1x1x32xf32>
    %84 = vector.shape_cast %83 : vector<1x1x32xf32> to vector<1x32xf32>
    %85 = arith.mulf %82, %82 : vector<16x32xf32>
    %cst_60 = arith.constant dense<0.000000e+00> : vector<16xf32>
    %86 = vector.multi_reduction <add>, %85, %cst_60 [1] : vector<16x32xf32> to vector<16xf32>
    %87 = vector.shape_cast %86 : vector<16xf32> to vector<16x1xf32>
    %cst_61 = arith.constant 3.200000e+01 : f32
    %88 = vector.broadcast %cst_61 : f32 to vector<16x1xf32>
    %89 = arith.divf %87, %88 : vector<16x1xf32>
    %cst_62 = arith.constant 9.99999997E-7 : f32
    %90 = vector.broadcast %cst_62 : f32 to vector<16x1xf32>
    %91 = arith.addf %89, %90 : vector<16x1xf32>
    %92 = math.rsqrt %91 : vector<16x1xf32>
    %93 = vector.broadcast %92 : vector<16x1xf32> to vector<16x32xf32>
    %94 = arith.mulf %82, %93 : vector<16x32xf32>
    %95 = vector.broadcast %84 : vector<1x32xf32> to vector<16x32xf32>
    %96 = arith.mulf %94, %95 : vector<16x32xf32>
    %97 = arith.truncf %96 : vector<16x32xf32> to vector<16x32xbf16>
    %c0_63 = arith.constant 0 : index
    %c0_64 = arith.constant 0 : index
    %c0_65 = arith.constant 0 : index
    %98 = vector.load %arg8[%c0_63, %c0_64, %c0_65] : memref<2x32x64xbf16, #tpu.memory_space<vmem>>, vector<1x32x64xbf16>
    %99 = vector.shape_cast %98 : vector<1x32x64xbf16> to vector<32x64xbf16>
    %cst_66 = arith.constant dense<0.000000e+00> : vector<16x64xf32>
    %100 = tpu.matmul %97, %99, %cst_66 {dimension_numbers = #tpu.dot_dimension_numbers<[1], [0], [0], [1], [0, 0, 1, 1], [], []>} : vector<16x32xbf16>, vector<32x64xbf16>, vector<16x64xf32> -> vector<16x64xf32>
    %cst_67 = arith.constant 0.000000e+00 : f32
    %101 = vector.broadcast %cst_67 : f32 to vector<16x64xf32>
    %102 = arith.maximumf %100, %101 : vector<16x64xf32>
    %103 = arith.truncf %102 : vector<16x64xf32> to vector<16x64xbf16>
    %c0_68 = arith.constant 0 : index
    %c0_69 = arith.constant 0 : index
    %c0_70 = arith.constant 0 : index
    %104 = vector.load %arg9[%c0_68, %c0_69, %c0_70] : memref<2x64x32xbf16, #tpu.memory_space<vmem>>, vector<1x64x32xbf16>
    %105 = vector.shape_cast %104 : vector<1x64x32xbf16> to vector<64x32xbf16>
    %cst_71 = arith.constant dense<0.000000e+00> : vector<16x32xf32>
    %106 = tpu.matmul %103, %105, %cst_71 {dimension_numbers = #tpu.dot_dimension_numbers<[1], [0], [0], [1], [0, 0, 1, 1], [], []>} : vector<16x64xbf16>, vector<64x32xbf16>, vector<16x32xf32> -> vector<16x32xf32>
    %107 = arith.addf %82, %106 : vector<16x32xf32>
    %c1_72 = arith.constant 1 : index
    %c0_73 = arith.constant 0 : index
    %c0_74 = arith.constant 0 : index
    %108 = vector.load %arg2[%c1_72, %c0_73, %c0_74] : memref<2x1x32xf32, #tpu.memory_space<vmem>>, vector<1x1x32xf32>
    %109 = vector.shape_cast %108 : vector<1x1x32xf32> to vector<1x32xf32>
    %110 = arith.mulf %107, %107 : vector<16x32xf32>
    %cst_75 = arith.constant dense<0.000000e+00> : vector<16xf32>
    %111 = vector.multi_reduction <add>, %110, %cst_75 [1] : vector<16x32xf32> to vector<16xf32>
    %112 = vector.shape_cast %111 : vector<16xf32> to vector<16x1xf32>
    %cst_76 = arith.constant 3.200000e+01 : f32
    %113 = vector.broadcast %cst_76 : f32 to vector<16x1xf32>
    %114 = arith.divf %112, %113 : vector<16x1xf32>
    %cst_77 = arith.constant 9.99999997E-7 : f32
    %115 = vector.broadcast %cst_77 : f32 to vector<16x1xf32>
    %116 = arith.addf %114, %115 : vector<16x1xf32>
    %117 = math.rsqrt %116 : vector<16x1xf32>
    %118 = vector.broadcast %117 : vector<16x1xf32> to vector<16x32xf32>
    %119 = arith.mulf %107, %118 : vector<16x32xf32>
    %120 = vector.broadcast %109 : vector<1x32xf32> to vector<16x32xf32>
    %121 = arith.mulf %119, %120 : vector<16x32xf32>
    %122 = arith.truncf %121 : vector<16x32xf32> to vector<16x32xbf16>
    %cst_78 = arith.constant 0.000000e+00 : f32
    %123 = vector.broadcast %cst_78 : f32 to vector<16x32xf32>
    %c1_79 = arith.constant 1 : index
    %c0_80 = arith.constant 0 : index
    %c0_81 = arith.constant 0 : index
    %c0_82 = arith.constant 0 : index
    %124 = vector.load %arg3[%c1_79, %c0_80, %c0_81, %c0_82] : memref<2x2x32x16xbf16, #tpu.memory_space<vmem>>, vector<1x1x32x16xbf16>
    %125 = vector.shape_cast %124 : vector<1x1x32x16xbf16> to vector<32x16xbf16>
    %cst_83 = arith.constant dense<0.000000e+00> : vector<16x16xf32>
    %126 = tpu.matmul %122, %125, %cst_83 {dimension_numbers = #tpu.dot_dimension_numbers<[1], [0], [0], [1], [0, 0, 1, 1], [], []>} : vector<16x32xbf16>, vector<32x16xbf16>, vector<16x16xf32> -> vector<16x16xf32>
    %c1_84 = arith.constant 1 : index
    %c0_85 = arith.constant 0 : index
    %c0_86 = arith.constant 0 : index
    %c0_87 = arith.constant 0 : index
    %127 = vector.load %arg4[%c1_84, %c0_85, %c0_86, %c0_87] : memref<2x2x32x16xbf16, #tpu.memory_space<vmem>>, vector<1x1x32x16xbf16>
    %128 = vector.shape_cast %127 : vector<1x1x32x16xbf16> to vector<32x16xbf16>
    %cst_88 = arith.constant dense<0.000000e+00> : vector<16x16xf32>
    %129 = tpu.matmul %122, %128, %cst_88 {dimension_numbers = #tpu.dot_dimension_numbers<[1], [0], [0], [1], [0, 0, 1, 1], [], []>} : vector<16x32xbf16>, vector<32x16xbf16>, vector<16x16xf32> -> vector<16x16xf32>
    %c1_89 = arith.constant 1 : index
    %c0_90 = arith.constant 0 : index
    %c0_91 = arith.constant 0 : index
    %c0_92 = arith.constant 0 : index
    %130 = vector.load %arg5[%c1_89, %c0_90, %c0_91, %c0_92] : memref<2x2x32x16xbf16, #tpu.memory_space<vmem>>, vector<1x1x32x16xbf16>
    %131 = vector.shape_cast %130 : vector<1x1x32x16xbf16> to vector<32x16xbf16>
    %cst_93 = arith.constant dense<0.000000e+00> : vector<16x16xf32>
    %132 = tpu.matmul %122, %131, %cst_93 {dimension_numbers = #tpu.dot_dimension_numbers<[1], [0], [0], [1], [0, 0, 1, 1], [], []>} : vector<16x32xbf16>, vector<32x16xbf16>, vector<16x16xf32> -> vector<16x16xf32>
    %133 = arith.truncf %126 : vector<16x16xf32> to vector<16x16xbf16>
    %134 = arith.truncf %129 : vector<16x16xf32> to vector<16x16xbf16>
    %cst_94 = arith.constant dense<0.000000e+00> : vector<16x16xf32>
    %135 = tpu.matmul %133, %134, %cst_94 {dimension_numbers = #tpu.dot_dimension_numbers<[1], [1], [0], [0], [0, 0, 1, 0], [], []>} : vector<16x16xbf16>, vector<16x16xbf16>, vector<16x16xf32> -> vector<16x16xf32>
    %136 = vector.extract_strided_slice %1 {offsets = [0, 0, 0], sizes = [1, 16, 16], strides = [1, 1, 1]} : vector<2x16x16xf32> to vector<1x16x16xf32>
    %137 = vector.shape_cast %136 : vector<1x16x16xf32> to vector<16x16xf32>
    %138 = arith.addf %135, %137 : vector<16x16xf32>
    %cst_95 = arith.constant dense<0xFF800000> : vector<16xf32>
    %139 = vector.multi_reduction <maximumf>, %138, %cst_95 [1] : vector<16x16xf32> to vector<16xf32>
    %140 = vector.shape_cast %139 : vector<16xf32> to vector<16x1xf32>
    %141 = vector.broadcast %140 : vector<16x1xf32> to vector<16x16xf32>
    %142 = arith.subf %138, %141 : vector<16x16xf32>
    %143 = math.exp %142 : vector<16x16xf32>
    %cst_96 = arith.constant dense<0.000000e+00> : vector<16xf32>
    %144 = vector.multi_reduction <add>, %143, %cst_96 [1] : vector<16x16xf32> to vector<16xf32>
    %145 = vector.shape_cast %144 : vector<16xf32> to vector<16x1xf32>
    %146 = vector.broadcast %145 : vector<16x1xf32> to vector<16x16xf32>
    %147 = arith.divf %143, %146 : vector<16x16xf32>
    %148 = arith.truncf %147 : vector<16x16xf32> to vector<16x16xbf16>
    %149 = arith.truncf %132 : vector<16x16xf32> to vector<16x16xbf16>
    %cst_97 = arith.constant dense<0.000000e+00> : vector<16x16xf32>
    %150 = tpu.matmul %148, %149, %cst_97 {dimension_numbers = #tpu.dot_dimension_numbers<[1], [0], [0], [1], [0, 0, 1, 1], [], []>} : vector<16x16xbf16>, vector<16x16xbf16>, vector<16x16xf32> -> vector<16x16xf32>
    %151 = arith.truncf %150 : vector<16x16xf32> to vector<16x16xbf16>
    %c1_98 = arith.constant 1 : index
    %c0_99 = arith.constant 0 : index
    %c0_100 = arith.constant 0 : index
    %c0_101 = arith.constant 0 : index
    %152 = vector.load %arg6[%c1_98, %c0_99, %c0_100, %c0_101] : memref<2x2x16x32xbf16, #tpu.memory_space<vmem>>, vector<1x1x16x32xbf16>
    %153 = vector.shape_cast %152 : vector<1x1x16x32xbf16> to vector<16x32xbf16>
    %cst_102 = arith.constant dense<0.000000e+00> : vector<16x32xf32>
    %154 = tpu.matmul %151, %153, %cst_102 {dimension_numbers = #tpu.dot_dimension_numbers<[1], [0], [0], [1], [0, 0, 1, 1], [], []>} : vector<16x16xbf16>, vector<16x32xbf16>, vector<16x32xf32> -> vector<16x32xf32>
    %155 = arith.addf %123, %154 : vector<16x32xf32>
    %c1_103 = arith.constant 1 : index
    %c1_104 = arith.constant 1 : index
    %c0_105 = arith.constant 0 : index
    %c0_106 = arith.constant 0 : index
    %156 = vector.load %arg3[%c1_103, %c1_104, %c0_105, %c0_106] : memref<2x2x32x16xbf16, #tpu.memory_space<vmem>>, vector<1x1x32x16xbf16>
    %157 = vector.shape_cast %156 : vector<1x1x32x16xbf16> to vector<32x16xbf16>
    %cst_107 = arith.constant dense<0.000000e+00> : vector<16x16xf32>
    %158 = tpu.matmul %122, %157, %cst_107 {dimension_numbers = #tpu.dot_dimension_numbers<[1], [0], [0], [1], [0, 0, 1, 1], [], []>} : vector<16x32xbf16>, vector<32x16xbf16>, vector<16x16xf32> -> vector<16x16xf32>
    %c1_108 = arith.constant 1 : index
    %c1_109 = arith.constant 1 : index
    %c0_110 = arith.constant 0 : index
    %c0_111 = arith.constant 0 : index
    %159 = vector.load %arg4[%c1_108, %c1_109, %c0_110, %c0_111] : memref<2x2x32x16xbf16, #tpu.memory_space<vmem>>, vector<1x1x32x16xbf16>
    %160 = vector.shape_cast %159 : vector<1x1x32x16xbf16> to vector<32x16xbf16>
    %cst_112 = arith.constant dense<0.000000e+00> : vector<16x16xf32>
    %161 = tpu.matmul %122, %160, %cst_112 {dimension_numbers = #tpu.dot_dimension_numbers<[1], [0], [0], [1], [0, 0, 1, 1], [], []>} : vector<16x32xbf16>, vector<32x16xbf16>, vector<16x16xf32> -> vector<16x16xf32>
    %c1_113 = arith.constant 1 : index
    %c1_114 = arith.constant 1 : index
    %c0_115 = arith.constant 0 : index
    %c0_116 = arith.constant 0 : index
    %162 = vector.load %arg5[%c1_113, %c1_114, %c0_115, %c0_116] : memref<2x2x32x16xbf16, #tpu.memory_space<vmem>>, vector<1x1x32x16xbf16>
    %163 = vector.shape_cast %162 : vector<1x1x32x16xbf16> to vector<32x16xbf16>
    %cst_117 = arith.constant dense<0.000000e+00> : vector<16x16xf32>
    %164 = tpu.matmul %122, %163, %cst_117 {dimension_numbers = #tpu.dot_dimension_numbers<[1], [0], [0], [1], [0, 0, 1, 1], [], []>} : vector<16x32xbf16>, vector<32x16xbf16>, vector<16x16xf32> -> vector<16x16xf32>
    %165 = arith.truncf %158 : vector<16x16xf32> to vector<16x16xbf16>
    %166 = arith.truncf %161 : vector<16x16xf32> to vector<16x16xbf16>
    %cst_118 = arith.constant dense<0.000000e+00> : vector<16x16xf32>
    %167 = tpu.matmul %165, %166, %cst_118 {dimension_numbers = #tpu.dot_dimension_numbers<[1], [1], [0], [0], [0, 0, 1, 0], [], []>} : vector<16x16xbf16>, vector<16x16xbf16>, vector<16x16xf32> -> vector<16x16xf32>
    %168 = vector.extract_strided_slice %1 {offsets = [1, 0, 0], sizes = [1, 16, 16], strides = [1, 1, 1]} : vector<2x16x16xf32> to vector<1x16x16xf32>
    %169 = vector.shape_cast %168 : vector<1x16x16xf32> to vector<16x16xf32>
    %170 = arith.addf %167, %169 : vector<16x16xf32>
    %cst_119 = arith.constant dense<0xFF800000> : vector<16xf32>
    %171 = vector.multi_reduction <maximumf>, %170, %cst_119 [1] : vector<16x16xf32> to vector<16xf32>
    %172 = vector.shape_cast %171 : vector<16xf32> to vector<16x1xf32>
    %173 = vector.broadcast %172 : vector<16x1xf32> to vector<16x16xf32>
    %174 = arith.subf %170, %173 : vector<16x16xf32>
    %175 = math.exp %174 : vector<16x16xf32>
    %cst_120 = arith.constant dense<0.000000e+00> : vector<16xf32>
    %176 = vector.multi_reduction <add>, %175, %cst_120 [1] : vector<16x16xf32> to vector<16xf32>
    %177 = vector.shape_cast %176 : vector<16xf32> to vector<16x1xf32>
    %178 = vector.broadcast %177 : vector<16x1xf32> to vector<16x16xf32>
    %179 = arith.divf %175, %178 : vector<16x16xf32>
    %180 = arith.truncf %179 : vector<16x16xf32> to vector<16x16xbf16>
    %181 = arith.truncf %164 : vector<16x16xf32> to vector<16x16xbf16>
    %cst_121 = arith.constant dense<0.000000e+00> : vector<16x16xf32>
    %182 = tpu.matmul %180, %181, %cst_121 {dimension_numbers = #tpu.dot_dimension_numbers<[1], [0], [0], [1], [0, 0, 1, 1], [], []>} : vector<16x16xbf16>, vector<16x16xbf16>, vector<16x16xf32> -> vector<16x16xf32>
    %183 = arith.truncf %182 : vector<16x16xf32> to vector<16x16xbf16>
    %c1_122 = arith.constant 1 : index
    %c1_123 = arith.constant 1 : index
    %c0_124 = arith.constant 0 : index
    %c0_125 = arith.constant 0 : index
    %184 = vector.load %arg6[%c1_122, %c1_123, %c0_124, %c0_125] : memref<2x2x16x32xbf16, #tpu.memory_space<vmem>>, vector<1x1x16x32xbf16>
    %185 = vector.shape_cast %184 : vector<1x1x16x32xbf16> to vector<16x32xbf16>
    %cst_126 = arith.constant dense<0.000000e+00> : vector<16x32xf32>
    %186 = tpu.matmul %183, %185, %cst_126 {dimension_numbers = #tpu.dot_dimension_numbers<[1], [0], [0], [1], [0, 0, 1, 1], [], []>} : vector<16x16xbf16>, vector<16x32xbf16>, vector<16x32xf32> -> vector<16x32xf32>
    %187 = arith.addf %155, %186 : vector<16x32xf32>
    %188 = arith.addf %107, %187 : vector<16x32xf32>
    %c1_127 = arith.constant 1 : index
    %c0_128 = arith.constant 0 : index
    %c0_129 = arith.constant 0 : index
    %189 = vector.load %arg7[%c1_127, %c0_128, %c0_129] : memref<2x1x32xf32, #tpu.memory_space<vmem>>, vector<1x1x32xf32>
    %190 = vector.shape_cast %189 : vector<1x1x32xf32> to vector<1x32xf32>
    %191 = arith.mulf %188, %188 : vector<16x32xf32>
    %cst_130 = arith.constant dense<0.000000e+00> : vector<16xf32>
    %192 = vector.multi_reduction <add>, %191, %cst_130 [1] : vector<16x32xf32> to vector<16xf32>
    %193 = vector.shape_cast %192 : vector<16xf32> to vector<16x1xf32>
    %cst_131 = arith.constant 3.200000e+01 : f32
    %194 = vector.broadcast %cst_131 : f32 to vector<16x1xf32>
    %195 = arith.divf %193, %194 : vector<16x1xf32>
    %cst_132 = arith.constant 9.99999997E-7 : f32
    %196 = vector.broadcast %cst_132 : f32 to vector<16x1xf32>
    %197 = arith.addf %195, %196 : vector<16x1xf32>
    %198 = math.rsqrt %197 : vector<16x1xf32>
    %199 = vector.broadcast %198 : vector<16x1xf32> to vector<16x32xf32>
    %200 = arith.mulf %188, %199 : vector<16x32xf32>
    %201 = vector.broadcast %190 : vector<1x32xf32> to vector<16x32xf32>
    %202 = arith.mulf %200, %201 : vector<16x32xf32>
    %203 = arith.truncf %202 : vector<16x32xf32> to vector<16x32xbf16>
    %c1_133 = arith.constant 1 : index
    %c0_134 = arith.constant 0 : index
    %c0_135 = arith.constant 0 : index
    %204 = vector.load %arg8[%c1_133, %c0_134, %c0_135] : memref<2x32x64xbf16, #tpu.memory_space<vmem>>, vector<1x32x64xbf16>
    %205 = vector.shape_cast %204 : vector<1x32x64xbf16> to vector<32x64xbf16>
    %cst_136 = arith.constant dense<0.000000e+00> : vector<16x64xf32>
    %206 = tpu.matmul %203, %205, %cst_136 {dimension_numbers = #tpu.dot_dimension_numbers<[1], [0], [0], [1], [0, 0, 1, 1], [], []>} : vector<16x32xbf16>, vector<32x64xbf16>, vector<16x64xf32> -> vector<16x64xf32>
    %cst_137 = arith.constant 0.000000e+00 : f32
    %207 = vector.broadcast %cst_137 : f32 to vector<16x64xf32>
    %208 = arith.maximumf %206, %207 : vector<16x64xf32>
    %209 = arith.truncf %208 : vector<16x64xf32> to vector<16x64xbf16>
    %c1_138 = arith.constant 1 : index
    %c0_139 = arith.constant 0 : index
    %c0_140 = arith.constant 0 : index
    %210 = vector.load %arg9[%c1_138, %c0_139, %c0_140] : memref<2x64x32xbf16, #tpu.memory_space<vmem>>, vector<1x64x32xbf16>
    %211 = vector.shape_cast %210 : vector<1x64x32xbf16> to vector<64x32xbf16>
    %cst_141 = arith.constant dense<0.000000e+00> : vector<16x32xf32>
    %212 = tpu.matmul %209, %211, %cst_141 {dimension_numbers = #tpu.dot_dimension_numbers<[1], [0], [0], [1], [0, 0, 1, 1], [], []>} : vector<16x64xbf16>, vector<64x32xbf16>, vector<16x32xf32> -> vector<16x32xf32>
    %213 = arith.addf %188, %212 : vector<16x32xf32>
    %c0_142 = arith.constant 0 : index
    %c0_143 = arith.constant 0 : index
    %214 = vector.load %arg10[%c0_142, %c0_143] : memref<1x32xf32, #tpu.memory_space<vmem>>, vector<1x32xf32>
    %215 = arith.mulf %213, %213 : vector<16x32xf32>
    %cst_144 = arith.constant dense<0.000000e+00> : vector<16xf32>
    %216 = vector.multi_reduction <add>, %215, %cst_144 [1] : vector<16x32xf32> to vector<16xf32>
    %217 = vector.shape_cast %216 : vector<16xf32> to vector<16x1xf32>
    %cst_145 = arith.constant 3.200000e+01 : f32
    %218 = vector.broadcast %cst_145 : f32 to vector<16x1xf32>
    %219 = arith.divf %217, %218 : vector<16x1xf32>
    %cst_146 = arith.constant 9.99999997E-7 : f32
    %220 = vector.broadcast %cst_146 : f32 to vector<16x1xf32>
    %221 = arith.addf %219, %220 : vector<16x1xf32>
    %222 = math.rsqrt %221 : vector<16x1xf32>
    %223 = vector.broadcast %222 : vector<16x1xf32> to vector<16x32xf32>
    %224 = arith.mulf %213, %223 : vector<16x32xf32>
    %225 = vector.broadcast %214 : vector<1x32xf32> to vector<16x32xf32>
    %226 = arith.mulf %224, %225 : vector<16x32xf32>
    %c0_147 = arith.constant 0 : index
    %c0_148 = arith.constant 0 : index
    %227 = vector.load %arg11[%c0_147, %c0_148] : memref<16x32xf32, #tpu.memory_space<vmem>>, vector<16x32xf32>
    tpu.vector_store %arg11[%c0_147, %c0_148], %226 {strides = array<i32>} : memref<16x32xf32, #tpu.memory_space<vmem>>, vector<16x32xf32>,
    return
  }
}

</mosaic_0001>

<llo_original>
// kernel: tile.9
$region0: #{tile.9}
  %s0 = inlined_call_operand.vmem [shape: f32[2,2,8,2,8], index: 0, kind: input, shape index: {}]
  %s1 = inlined_call_operand.vmem [shape: f32[2,16,16], index: 1, kind: output, shape index: {}]
  $region1: #{tile.9} parent=0
    #allocation0 [shape = 'u8[131072]{0}', space=vmem, size = 0x20000, scoped, tag = 'scoped mem for input reshape']
    %s3 = sshllo.u32 0, 2
    %s4 = smul.addr 2, 31
    %s5 = scalar_lea.vmem %s0, %s4
    %v6 = vld [vmem:[%s5] sm:%s3]
    %s7 = scalar_lea.vmem [#allocation0], 248
    %8 = vst [vmem:[%s7] sm:%s3] %v6
    %s9 = smul.addr 2, 30
    %s10 = scalar_lea.vmem %s0, %s9
    %v11 = vld [vmem:[%s10] sm:%s3]
    %s12 = scalar_lea.vmem [#allocation0], 240
    %13 = vst [vmem:[%s12] sm:%s3] %v11
    %s14 = smul.addr 2, 29
    %s15 = scalar_lea.vmem %s0, %s14
    %v16 = vld [vmem:[%s15] sm:%s3]
    %s17 = scalar_lea.vmem [#allocation0], 232
    %18 = vst [vmem:[%s17] sm:%s3] %v16
    %s19 = smul.addr 2, 28
    %s20 = scalar_lea.vmem %s0, %s19
    %v21 = vld [vmem:[%s20] sm:%s3]
    %s22 = scalar_lea.vmem [#allocation0], 224
    %23 = vst [vmem:[%s22] sm:%s3] %v21
    %s24 = smul.addr 2, 27
    %s25 = scalar_lea.vmem %s0, %s24
    %v26 = vld [vmem:[%s25] sm:%s3]
    %s27 = scalar_lea.vmem [#allocation0], 216
    %28 = vst [vmem:[%s27] sm:%s3] %v26
    %s29 = smul.addr 2, 26
    %s30 = scalar_lea.vmem %s0, %s29
    %v31 = vld [vmem:[%s30] sm:%s3]
    %s32 = scalar_lea.vmem [#allocation0], 208
    %33 = vst [vmem:[%s32] sm:%s3] %v31
    %s34 = smul.addr 2, 25
    %s35 = scalar_lea.vmem %s0, %s34
    %v36 = vld [vmem:[%s35] sm:%s3]
    %s37 = scalar_lea.vmem [#allocation0], 200
    %38 = vst [vmem:[%s37] sm:%s3] %v36
    %s39 = smul.addr 2, 24
    %s40 = scalar_lea.vmem %s0, %s39
    %v41 = vld [vmem:[%s40] sm:%s3]
    %s42 = scalar_lea.vmem [#allocation0], 192
    %43 = vst [vmem:[%s42] sm:%s3] %v41
    %s44 = smul.addr 2, 23
    %s45 = scalar_lea.vmem %s0, %s44
    %v46 = vld [vmem:[%s45] sm:%s3]
    %s47 = scalar_lea.vmem [#allocation0], 184
    %48 = vst [vmem:[%s47] sm:%s3] %v46
    %s49 = smul.addr 2, 22
    %s50 = scalar_lea.vmem %s0, %s49
    %v51 = vld [vmem:[%s50] sm:%s3]
    %s52 = scalar_lea.vmem [#allocation0], 176
    %53 = vst [vmem:[%s52] sm:%s3] %v51
    %s54 = smul.addr 2, 21
    %s55 = scalar_lea.vmem %s0, %s54
    %v56 = vld [vmem:[%s55] sm:%s3]
    %s57 = scalar_lea.vmem [#allocation0], 168
    %58 = vst [vmem:[%s57] sm:%s3] %v56
    %s59 = smul.addr 2, 20
    %s60 = scalar_lea.vmem %s0, %s59
    %v61 = vld [vmem:[%s60] sm:%s3]
    %s62 = scalar_lea.vmem [#allocation0], 160
    %63 = vst [vmem:[%s62] sm:%s3] %v61
    %s64 = smul.addr 2, 19
    %s65 = scalar_lea.vmem %s0, %s64
    %v66 = vld [vmem:[%s65] sm:%s3]
    %s67 = scalar_lea.vmem [#allocation0], 152
    %68 = vst [vmem:[%s67] sm:%s3] %v66
    %s69 = smul.addr 2, 18
    %s70 = scalar_lea.vmem %s0, %s69
    %v71 = vld [vmem:[%s70] sm:%s3]
    %s72 = scalar_lea.vmem [#allocation0], 144
    %73 = vst [vmem:[%s72] sm:%s3] %v71
    %s74 = smul.addr 2, 17
    %s75 = scalar_lea.vmem %s0, %s74
    %v76 = vld [vmem:[%s75] sm:%s3]
    %s77 = scalar_lea.vmem [#allocation0], 136
    %78 = vst [vmem:[%s77] sm:%s3] %v76
    %s79 = smul.addr 2, 16
    %s80 = scalar_lea.vmem %s0, %s79
    %v81 = vld [vmem:[%s80] sm:%s3]
    %s82 = scalar_lea.vmem [#allocation0], 128
    %83 = vst [vmem:[%s82] sm:%s3] %v81
    %s84 = smul.addr 2, 15
    %s85 = scalar_lea.vmem %s0, %s84
    %v86 = vld [vmem:[%s85] sm:%s3]
    %s87 = scalar_lea.vmem [#allocation0], 120
    %88 = vst [vmem:[%s87] sm:%s3] %v86
    %s89 = smul.addr 2, 14
    %s90 = scalar_lea.vmem %s0, %s89
    %v91 = vld [vmem:[%s90] sm:%s3]
    %s92 = scalar_lea.vmem [#allocation0], 112
    %93 = vst [vmem:[%s92] sm:%s3] %v91
    %s94 = smul.addr 2, 13
    %s95 = scalar_lea.vmem %s0, %s94
    %v96 = vld [vmem:[%s95] sm:%s3]
    %s97 = scalar_lea.vmem [#allocation0], 104
    %98 = vst [vmem:[%s97] sm:%s3] %v96
    %s99 = smul.addr 2, 12
    %s100 = scalar_lea.vmem %s0, %s99
    %v101 = vld [vmem:[%s100] sm:%s3]
    %s102 = scalar_lea.vmem [#allocation0], 96
    %103 = vst [vmem:[%s102] sm:%s3] %v101
    %s104 = smul.addr 2, 11
    %s105 = scalar_lea.vmem %s0, %s104
    %v106 = vld [vmem:[%s105] sm:%s3]
    %s107 = scalar_lea.vmem [#allocation0], 88
    %108 = vst [vmem:[%s107] sm:%s3] %v106
    %s109 = smul.addr 2, 10
    %s110 = scalar_lea.vmem %s0, %s109
    %v111 = vld [vmem:[%s110] sm:%s3]
    %s112 = scalar_lea.vmem [#allocation0], 80
    %113 = vst [vmem:[%s112] sm:%s3] %v111
    %s114 = smul.addr 2, 9
    %s115 = scalar_lea.vmem %s0, %s114
    %v116 = vld [vmem:[%s115] sm:%s3]
    %s117 = scalar_lea.vmem [#allocation0], 72
    %118 = vst [vmem:[%s117] sm:%s3] %v116
    %s119 = smul.addr 2, 8
    %s120 = scalar_lea.vmem %s0, %s119
    %v121 = vld [vmem:[%s120] sm:%s3]
    %s122 = scalar_lea.vmem [#allocation0], 64
    %123 = vst [vmem:[%s122] sm:%s3] %v121
    %s124 = smul.addr 2, 7
    %s125 = scalar_lea.vmem %s0, %s124
    %v126 = vld [vmem:[%s125] sm:%s3]
    %s127 = scalar_lea.vmem [#allocation0], 56
    %128 = vst [vmem:[%s127] sm:%s3] %v126
    %s129 = smul.addr 2, 6
    %s130 = scalar_lea.vmem %s0, %s129
    %v131 = vld [vmem:[%s130] sm:%s3]
    %s132 = scalar_lea.vmem [#allocation0], 48
    %133 = vst [vmem:[%s132] sm:%s3] %v131
    %s134 = smul.addr 2, 5
    %s135 = scalar_lea.vmem %s0, %s134
    %v136 = vld [vmem:[%s135] sm:%s3]
    %s137 = scalar_lea.vmem [#allocation0], 40
    %138 = vst [vmem:[%s137] sm:%s3] %v136
    %s139 = smul.addr 2, 4
    %s140 = scalar_lea.vmem %s0, %s139
    %v141 = vld [vmem:[%s140] sm:%s3]
    %s142 = scalar_lea.vmem [#allocation0], 32
    %143 = vst [vmem:[%s142] sm:%s3] %v141
    %s144 = smul.addr 2, 3
    %s145 = scalar_lea.vmem %s0, %s144
    %v146 = vld [vmem:[%s145] sm:%s3]
    %s147 = scalar_lea.vmem [#allocation0], 24
    %148 = vst [vmem:[%s147] sm:%s3] %v146
    %s149 = smul.addr 2, 2
    %s150 = scalar_lea.vmem %s0, %s149
    %v151 = vld [vmem:[%s150] sm:%s3]
    %s152 = scalar_lea.vmem [#allocation0], 16
    %153 = vst [vmem:[%s152] sm:%s3] %v151
    %s154 = scalar_lea.vmem %s0, 2
    %v155 = vld [vmem:[%s154] sm:%s3]
    %s156 = scalar_lea.vmem [#allocation0], 8
    %157 = vst [vmem:[%s156] sm:%s3] %v155
    %v158 = vld [vmem:[%s0] sm:%s3]
    %159 = vst [vmem:[#allocation0] sm:%s3] %v158
    %v160 = vld [vmem:[#allocation0] ss:$8 sm:$0xf]
    %v161 = vld [vmem:[#allocation0] ss:$8 sm:$0xf0]
    %vm162 = vcmask 1047556
    %v163 = vsel %vm162, %v161, %v160
    %vm164 = vcmask 64512
    %165 = vst.msk [vmem:[%s1] sm:$0xff] %vm164, %v163
    %s166 = scalar_lea.vmem [#allocation0], 64
    %v167 = vld [vmem:[%s166] ss:$8 sm:$0xf]
    %s168 = scalar_lea.vmem [#allocation0], 64
    %v169 = vld [vmem:[%s168] ss:$8 sm:$0xf0]
    %vm170 = vcmask 1047556
    %v171 = vsel %vm170, %v169, %v167
    %vm172 = vcmask 64512
    %s173 = scalar_lea.vmem %s1, 8
    %174 = vst.msk [vmem:[%s173] sm:$0xff] %vm172, %v171
    %s175 = scalar_lea.vmem [#allocation0], 128
    %v176 = vld [vmem:[%s175] ss:$8 sm:$0xf]
    %s177 = scalar_lea.vmem [#allocation0], 128
    %v178 = vld [vmem:[%s177] ss:$8 sm:$0xf0]
    %vm179 = vcmask 1047556
    %v180 = vsel %vm179, %v178, %v176
    %vm181 = vcmask 64512
    %s182 = scalar_lea.vmem %s1, 16
    %183 = vst.msk [vmem:[%s182] sm:$0xff] %vm181, %v180
    %s184 = scalar_lea.vmem [#allocation0], 192
    %v185 = vld [vmem:[%s184] ss:$8 sm:$0xf]
    %s186 = scalar_lea.vmem [#allocation0], 192
    %v187 = vld [vmem:[%s186] ss:$8 sm:$0xf0]
    %vm188 = vcmask 1047556
    %v189 = vsel %vm188, %v187, %v185
    %vm190 = vcmask 64512
    %s191 = scalar_lea.vmem %s1, 24
    %192 = vst.msk [vmem:[%s191] sm:$0xff] %vm190, %v189
    %s193 = scalar_lea.vmem [#allocation0], 1
    %v194 = vld [vmem:[%s193] ss:$8 sm:$0xf]
    %s195 = scalar_lea.vmem [#allocation0], 1
    %v196 = vld [vmem:[%s195] ss:$8 sm:$0xf0]
    %vm197 = vcmask 1047556
    %v198 = vsel %vm197, %v196, %v194
    %199 = vrot.lane.b32.xlu0 %v198, 8
    %v200 = vpop.permute.xlu0 %199
    %vm201 = vcmask 130112
    %202 = vst.msk [vmem:[%s1] sm:$0xff] %vm201, %v200
    %s203 = scalar_lea.vmem [#allocation0], 65
    %v204 = vld [vmem:[%s203] ss:$8 sm:$0xf]
    %s205 = scalar_lea.vmem [#allocation0], 65
    %v206 = vld [vmem:[%s205] ss:$8 sm:$0xf0]
    %vm207 = vcmask 1047556
    %v208 = vsel %vm207, %v206, %v204
    %209 = vrot.lane.b32.xlu0 %v208, 8
    %v210 = vpop.permute.xlu0 %209
    %vm211 = vcmask 130112
    %s212 = scalar_lea.vmem %s1, 8
    %213 = vst.msk [vmem:[%s212] sm:$0xff] %vm211, %v210
    %s214 = scalar_lea.vmem [#allocation0], 129
    %v215 = vld [vmem:[%s214] ss:$8 sm:$0xf]
    %s216 = scalar_lea.vmem [#allocation0], 129
    %v217 = vld [vmem:[%s216] ss:$8 sm:$0xf0]
    %vm218 = vcmask 1047556
    %v219 = vsel %vm218, %v217, %v215
    %220 = vrot.lane.b32.xlu0 %v219, 8
    %v221 = vpop.permute.xlu0 %220
    %vm222 = vcmask 130112
    %s223 = scalar_lea.vmem %s1, 16
    %224 = vst.msk [vmem:[%s223] sm:$0xff] %vm222, %v221
    %s225 = scalar_lea.vmem [#allocation0], 193
    %v226 = vld [vmem:[%s225] ss:$8 sm:$0xf]
    %s227 = scalar_lea.vmem [#allocation0], 193
    %v228 = vld [vmem:[%s227] ss:$8 sm:$0xf0]
    %vm229 = vcmask 1047556
    %v230 = vsel %vm229, %v228, %v226
    %231 = vrot.lane.b32.xlu0 %v230, 8
    %v232 = vpop.permute.xlu0 %231
    %vm233 = vcmask 130112
    %s234 = scalar_lea.vmem %s1, 24
    %235 = vst.msk [vmem:[%s234] sm:$0xff] %vm233, %v232

// kernel: encoder_forward.1
$region0: #{encoder_forward.1}
  #allocation0 [shape = 'u32[]', space=smem, size = 0x4, offset = 0x4, fixed_abs, tag = 'smem constant byte address 0x4 - core index']
  #allocation1 [shape = 'u32[144,128]{1,0:T(1,128)}', space=vmem, size = 0x12000, scoped, tag = 'internal scratch']
  %s0 = inlined_call_operand.vmem [shape: f32[16,32], index: 0, kind: input, shape index: {}]
  %s1 = inlined_call_operand.vmem [shape: f32[2,16,16], index: 1, kind: input, shape index: {}]
  %s2 = inlined_call_operand.vmem [shape: f32[2,1,32], index: 2, kind: input, shape index: {}]
  %s3 = inlined_call_operand.vmem [shape: bf16[2,2,32,16], index: 3, kind: input, shape index: {}]
  %s4 = inlined_call_operand.vmem [shape: bf16[2,2,32,16], index: 4, kind: input, shape index: {}]
  %s5 = inlined_call_operand.vmem [shape: bf16[2,2,32,16], index: 5, kind: input, shape index: {}]
  %s6 = inlined_call_operand.vmem [shape: bf16[2,2,16,32], index: 6, kind: input, shape index: {}]
  %s7 = inlined_call_operand.vmem [shape: f32[2,1,32], index: 7, kind: input, shape index: {}]
  %s8 = inlined_call_operand.vmem [shape: bf16[2,32,64], index: 8, kind: input, shape index: {}]
  %s9 = inlined_call_operand.vmem [shape: bf16[2,64,32], index: 9, kind: input, shape index: {}]
  %s10 = inlined_call_operand.vmem [shape: f32[1,32], index: 10, kind: input, shape index: {}]
  %s11 = inlined_call_operand.hbm [shape: f32[16,32], index: 11, kind: output, shape index: {}]
  %s12 = sld [smem:[#allocation0]]
  $region54: #{encoder_forward.1} parent=0
    _
  %s14 = ssub.s32 1, %s12
  %s15 = scalar_select 0, %s14, %s12
  $region1: #{encoder_forward.1} parent=0
    #allocation2 [shape = 'u8[8192]{0}', space=vmem, size = 0x2000, scoped, tag = 'output window, operand 0, single buffered']
    #allocation3 [shape = 's32[1]{0}', space=sflag, size = 0x4, scoped, tag = 'scoped memory for encoder_forward.1']
    %16 = vsyncpa [#allocation3], 0
    // Predicated region
    $region2: #{encoder_forward.1} parent=1 // pred_check
      _
    $region3: #{encoder_forward.1} parent=1 // pred_check_branch
      %18 = sbr.rel (0) target = $region5
    $region4: #{encoder_forward.1} parent=1 // pred_region
      _
    $region5: #{encoder_forward.1} parent=1 // pred_fallthru
      _
    // Predicated region
    $region6: #{encoder_forward.1} parent=1 // pred_check
      _
    $region7: #{encoder_forward.1} parent=1 // pred_check_branch
      %20 = sbr.rel (0) target = $region9
    $region8: #{encoder_forward.1} parent=1 // pred_region
      _
    $region9: #{encoder_forward.1} parent=1 // pred_fallthru
      _
    // Predicated region
    $region10: #{encoder_forward.1} parent=1 // pred_check
      _
    $region11: #{encoder_forward.1} parent=1 // pred_check_branch
      %22 = sbr.rel (0) target = $region13
    $region12: #{encoder_forward.1} parent=1 // pred_region
      _
    $region13: #{encoder_forward.1} parent=1 // pred_fallthru
      _
    // Predicated region
    $region14: #{encoder_forward.1} parent=1 // pred_check
      _
    $region15: #{encoder_forward.1} parent=1 // pred_check_branch
      %24 = sbr.rel (0) target = $region17
    $region16: #{encoder_forward.1} parent=1 // pred_region
      _
    $region17: #{encoder_forward.1} parent=1 // pred_fallthru
      _
    // Predicated region
    $region18: #{encoder_forward.1} parent=1 // pred_check
      _
    $region19: #{encoder_forward.1} parent=1 // pred_check_branch
      %26 = sbr.rel (0) target = $region21
    $region20: #{encoder_forward.1} parent=1 // pred_region
      _
    $region21: #{encoder_forward.1} parent=1 // pred_fallthru
      _
    // Predicated region
    $region22: #{encoder_forward.1} parent=1 // pred_check
      _
    $region23: #{encoder_forward.1} parent=1 // pred_check_branch
      %28 = sbr.rel (0) target = $region25
    $region24: #{encoder_forward.1} parent=1 // pred_region
      _
    $region25: #{encoder_forward.1} parent=1 // pred_fallthru
      _
    // Predicated region
    $region26: #{encoder_forward.1} parent=1 // pred_check
      _
    $region27: #{encoder_forward.1} parent=1 // pred_check_branch
      %30 = sbr.rel (0) target = $region29
    $region28: #{encoder_forward.1} parent=1 // pred_region
      _
    $region29: #{encoder_forward.1} parent=1 // pred_fallthru
      _
    // Predicated region
    $region30: #{encoder_forward.1} parent=1 // pred_check
      _
    $region31: #{encoder_forward.1} parent=1 // pred_check_branch
      %32 = sbr.rel (0) target = $region33
    $region32: #{encoder_forward.1} parent=1 // pred_region
      _
    $region33: #{encoder_forward.1} parent=1 // pred_fallthru
      _
    // Predicated region
    $region34: #{encoder_forward.1} parent=1 // pred_check
      _
    $region35: #{encoder_forward.1} parent=1 // pred_check_branch
      %34 = sbr.rel (0) target = $region37
    $region36: #{encoder_forward.1} parent=1 // pred_region
      _
    $region37: #{encoder_forward.1} parent=1 // pred_fallthru
      _
    // Predicated region
    $region38: #{encoder_forward.1} parent=1 // pred_check
      _
    $region39: #{encoder_forward.1} parent=1 // pred_check_branch
      %36 = sbr.rel (0) target = $region41
    $region40: #{encoder_forward.1} parent=1 // pred_region
      _
    $region41: #{encoder_forward.1} parent=1 // pred_fallthru
      _
    // Predicated region
    $region42: #{encoder_forward.1} parent=1 // pred_check
      _
    $region43: #{encoder_forward.1} parent=1 // pred_check_branch
      %38 = sbr.rel (0) target = $region45
    $region44: #{encoder_forward.1} parent=1 // pred_region
      _
    $region45: #{encoder_forward.1} parent=1 // pred_fallthru
      _
    %v40 = vld [vmem:[%s0] sm:$0xff]
    %v41 = vld [vmem:[%s0 + $0x8] sm:$0xff]
    %v42 = vld [vmem:[%s1] sm:$0xff]
    %v43 = vld [vmem:[%s1 + $0x8] sm:$0xff]
    %v44 = vld [vmem:[%s1 + $0x10] sm:$0xff]
    %v45 = vld [vmem:[%s1 + $0x18] sm:$0xff]
    %v46 = vld [vmem:[%s2] sm:$0x1]
    %v47 = vmul.f32 %v40, %v40
    %v48 = vmul.f32 %v41, %v41
    %vm49 = vcmask 261120
    %v50 = vsel %vm49, %v47, 0.0
    %51 = vadd.xlane.f32.xlu0 %v50
    %v52 = vpop.xlane.xlu0 %51
    %v53 = vsel %vm49, %v48, 0.0
    %54 = vadd.xlane.f32.xlu0 %v53
    %v55 = vpop.xlane.xlu0 %54
    %v56 = vrcp.pop 32.0
    %v57 = vmul.f32 %v52, %v56
    %v58 = vmul.f32 %v55, %v56
    %v59 = vadd.f32 %v57, 1e-06
    %v60 = vadd.f32 %v58, 1e-06
    %v61 = vrsqrt.pop %v59
    %v62 = vrsqrt.pop %v60
    %v63 = vmul.f32 %v40, %v61
    %v64 = vmul.f32 %v41, %v62
    %v66 = vlaneseq
    %v67 = vshrl.u32 %v66, 7
    %v68 = vsub.s32 0, %v67
    %v69 = vrot.slane %v46, %v68
    %v71 = vmul.f32 %v63, %v69
    %v72 = vmul.f32 %v64, %v69
    %v73 = vpack.c.bf16 %v72, %v71
    %v74 = vld [vmem:[%s3] sm:$0xf]
    %v75 = vld [vmem:[%s3 + $0x4] sm:$0xf]
    %v76 = vld [vmem:[%s3 + $0x8] sm:$0xf]
    %v77 = vld [vmem:[%s3 + $0xc] sm:$0xf]
    %v82 = vunpack.c.l.b16 %v74
    %v83 = vunpack.c.l.b16 %v75
    %v84 = vunpack.c.l.b16 %v76
    %v85 = vunpack.c.l.b16 %v77
    %v86 = vpack.c.b16 %v83, %v82
    %v87 = vpack.c.b16 %v85, %v84
    %v91 = vsel %vm49, %v73, 0
    %93 = vmatprep.subr.bf16.mxu0 0
    %94 = vmatpush1.bf16.msra.mxu0 %v86
    %95 = vmatprep.subr.bf16.mxu0 0
    %96 = vmatpush1.bf16.msra.mxu0 %v87
    %97 = vmatprep.subr.bf16.mxu0 0
    %98 = vmatpush1.bf16.msra.mxu0 0
    %99 = vmatprep.subr.bf16.mxu0 0
    %100 = vmatpush1.bf16.msra.mxu0 0
    %101 = vmatprep.subr.bf16.mxu0 0
    %102 = vmatpush1.bf16.msra.mxu0 0
    %103 = vmatprep.subr.bf16.mxu0 0
    %104 = vmatpush1.bf16.msra.mxu0 0
    %105 = vmatprep.subr.bf16.mxu0 0
    %106 = vmatpush1.bf16.msra.mxu0 0
    %107 = vmatprep.subr.bf16.mxu0 0
    %108 = vmatpush1.bf16.msra.mxu0 0
    %109 = vmatprep.subr.bf16.mxu0 0
    %110 = vmatpush1.bf16.msra.mxu0 0
    %111 = vmatprep.subr.bf16.mxu0 0
    %112 = vmatpush1.bf16.msra.mxu0 0
    %113 = vmatprep.subr.bf16.mxu0 0
    %114 = vmatpush1.bf16.msra.mxu0 0
    %115 = vmatprep.subr.bf16.mxu0 0
    %116 = vmatpush1.bf16.msra.mxu0 0
    %117 = vmatprep.subr.bf16.mxu0 0
    %118 = vmatpush1.bf16.msra.mxu0 0
    %119 = vmatprep.subr.bf16.mxu0 0
    %120 = vmatpush1.bf16.msra.mxu0 0
    %121 = vmatprep.subr.bf16.mxu0 0
    %122 = vmatpush1.bf16.msra.mxu0 0
    %123 = vmatprep.subr.bf16.mxu0 0
    %124 = vmatpush1.bf16.msra.mxu0 0
    %125 = vmatprep.mubr.bf16.mxu0 0
    %126 = vmatmul.mubr.bf16.gmra.mrb[0].mxu0 %v91
    %v127 = vpop.f32.mrb[0].mxu0
    %v128 = vadd.f32 0.0, %v127
    %v129 = vpop.f32.mrb[0].mxu0
    %v130 = vpop.f32.mrb[0].mxu0
    %v131 = vadd.f32 0.0, %v130
    %v132 = vpop.f32.mrb[0].mxu0
    %133 = vdwg.mxu0
    %v134 = vld [vmem:[%s4] sm:$0xf]
    %v135 = vld [vmem:[%s4 + $0x4] sm:$0xf]
    %v136 = vld [vmem:[%s4 + $0x8] sm:$0xf]
    %v137 = vld [vmem:[%s4 + $0xc] sm:$0xf]
    %v142 = vunpack.c.l.b16 %v134
    %v143 = vunpack.c.l.b16 %v135
    %v144 = vunpack.c.l.b16 %v136
    %v145 = vunpack.c.l.b16 %v137
    %v146 = vpack.c.b16 %v143, %v142
    %v147 = vpack.c.b16 %v145, %v144
    %150 = vmatprep.subr.bf16.mxu0 0
    %151 = vmatpush1.bf16.msra.mxu0 %v146
    %152 = vmatprep.subr.bf16.mxu0 0
    %153 = vmatpush1.bf16.msra.mxu0 %v147
    %154 = vmatprep.subr.bf16.mxu0 0
    %155 = vmatpush1.bf16.msra.mxu0 0
    %156 = vmatprep.subr.bf16.mxu0 0
    %157 = vmatpush1.bf16.msra.mxu0 0
    %158 = vmatprep.subr.bf16.mxu0 0
    %159 = vmatpush1.bf16.msra.mxu0 0
    %160 = vmatprep.subr.bf16.mxu0 0
    %161 = vmatpush1.bf16.msra.mxu0 0
    %162 = vmatprep.subr.bf16.mxu0 0
    %163 = vmatpush1.bf16.msra.mxu0 0
    %164 = vmatprep.subr.bf16.mxu0 0
    %165 = vmatpush1.bf16.msra.mxu0 0
    %166 = vmatprep.subr.bf16.mxu0 0
    %167 = vmatpush1.bf16.msra.mxu0 0
    %168 = vmatprep.subr.bf16.mxu0 0
    %169 = vmatpush1.bf16.msra.mxu0 0
    %170 = vmatprep.subr.bf16.mxu0 0
    %171 = vmatpush1.bf16.msra.mxu0 0
    %172 = vmatprep.subr.bf16.mxu0 0
    %173 = vmatpush1.bf16.msra.mxu0 0
    %174 = vmatprep.subr.bf16.mxu0 0
    %175 = vmatpush1.bf16.msra.mxu0 0
    %176 = vmatprep.subr.bf16.mxu0 0
    %177 = vmatpush1.bf16.msra.mxu0 0
    %178 = vmatprep.subr.bf16.mxu0 0
    %179 = vmatpush1.bf16.msra.mxu0 0
    %180 = vmatprep.subr.bf16.mxu0 0
    %181 = vmatpush1.bf16.msra.mxu0 0
    %182 = vmatprep.mubr.bf16.mxu0 0
    %183 = vmatmul.mubr.bf16.gmra.mrb[0].mxu0 %v91
    %v184 = vpop.f32.mrb[0].mxu0
    %v185 = vadd.f32 0.0, %v184
    %v186 = vpop.f32.mrb[0].mxu0
    %v187 = vpop.f32.mrb[0].mxu0
    %v188 = vadd.f32 0.0, %v187
    %v189 = vpop.f32.mrb[0].mxu0
    %190 = vdwg.mxu0
    %v191 = vld [vmem:[%s5] sm:$0xf]
    %v192 = vld [vmem:[%s5 + $0x4] sm:$0xf]
    %v193 = vld [vmem:[%s5 + $0x8] sm:$0xf]
    %v194 = vld [vmem:[%s5 + $0xc] sm:$0xf]
    %v199 = vunpack.c.l.b16 %v191
    %v200 = vunpack.c.l.b16 %v192
    %v201 = vunpack.c.l.b16 %v193
    %v202 = vunpack.c.l.b16 %v194
    %v203 = vpack.c.b16 %v200, %v199
    %v204 = vpack.c.b16 %v202, %v201
    %207 = vmatprep.subr.bf16.mxu0 0
    %208 = vmatpush1.bf16.msra.mxu0 %v203
    %209 = vmatprep.subr.bf16.mxu0 0
    %210 = vmatpush1.bf16.msra.mxu0 %v204
    %211 = vmatprep.subr.bf16.mxu0 0
    %212 = vmatpush1.bf16.msra.mxu0 0
    %213 = vmatprep.subr.bf16.mxu0 0
    %214 = vmatpush1.bf16.msra.mxu0 0
    %215 = vmatprep.subr.bf16.mxu0 0
    %216 = vmatpush1.bf16.msra.mxu0 0
    %217 = vmatprep.subr.bf16.mxu0 0
    %218 = vmatpush1.bf16.msra.mxu0 0
    %219 = vmatprep.subr.bf16.mxu0 0
    %220 = vmatpush1.bf16.msra.mxu0 0
    %221 = vmatprep.subr.bf16.mxu0 0
    %222 = vmatpush1.bf16.msra.mxu0 0
    %223 = vmatprep.subr.bf16.mxu0 0
    %224 = vmatpush1.bf16.msra.mxu0 0
    %225 = vmatprep.subr.bf16.mxu0 0
    %226 = vmatpush1.bf16.msra.mxu0 0
    %227 = vmatprep.subr.bf16.mxu0 0
    %228 = vmatpush1.bf16.msra.mxu0 0
    %229 = vmatprep.subr.bf16.mxu0 0
    %230 = vmatpush1.bf16.msra.mxu0 0
    %231 = vmatprep.subr.bf16.mxu0 0
    %232 = vmatpush1.bf16.msra.mxu0 0
    %233 = vmatprep.subr.bf16.mxu0 0
    %234 = vmatpush1.bf16.msra.mxu0 0
    %235 = vmatprep.subr.bf16.mxu0 0
    %236 = vmatpush1.bf16.msra.mxu0 0
    %237 = vmatprep.subr.bf16.mxu0 0
    %238 = vmatpush1.bf16.msra.mxu0 0
    %239 = vmatprep.mubr.bf16.mxu0 0
    %240 = vmatmul.mubr.bf16.gmra.mrb[0].mxu0 %v91
    %v241 = vpop.f32.mrb[0].mxu0
    %v242 = vadd.f32 0.0, %v241
    %v243 = vpop.f32.mrb[0].mxu0
    %v244 = vpop.f32.mrb[0].mxu0
    %v245 = vadd.f32 0.0, %v244
    %v246 = vpop.f32.mrb[0].mxu0
    %247 = vdwg.mxu0
    %v248 = vpack.c.bf16 %v131, %v128
    %v249 = vpack.c.bf16 %v188, %v185
    %vm250 = vcmask 130048
    %v252 = vsel %vm250, %v248, 0
    %v255 = vsel %vm250, %v249, 0
    %257 = vmatprep.subr.bf16.mxu0 0
    %258 = vmatpush1.bf16.xpose.msra.mxu0 %v255
    %259 = vmatprep.subr.bf16.mxu0 0
    %260 = vmatpush1.bf16.xpose.msra.mxu0 0
    %261 = vmatprep.subr.bf16.mxu0 0
    %262 = vmatpush1.bf16.xpose.msra.mxu0 0
    %263 = vmatprep.subr.bf16.mxu0 0
    %264 = vmatpush1.bf16.xpose.msra.mxu0 0
    %265 = vmatprep.subr.bf16.mxu0 0
    %266 = vmatpush1.bf16.xpose.msra.mxu0 0
    %267 = vmatprep.subr.bf16.mxu0 0
    %268 = vmatpush1.bf16.xpose.msra.mxu0 0
    %269 = vmatprep.subr.bf16.mxu0 0
    %270 = vmatpush1.bf16.xpose.msra.mxu0 0
    %271 = vmatprep.subr.bf16.mxu0 0
    %272 = vmatpush1.bf16.xpose.msra.mxu0 0
    %273 = vmatprep.subr.bf16.mxu0 0
    %274 = vmatpush1.bf16.xpose.msra.mxu0 0
    %275 = vmatprep.subr.bf16.mxu0 0
    %276 = vmatpush1.bf16.xpose.msra.mxu0 0
    %277 = vmatprep.subr.bf16.mxu0 0
    %278 = vmatpush1.bf16.xpose.msra.mxu0 0
    %279 = vmatprep.subr.bf16.mxu0 0
    %280 = vmatpush1.bf16.xpose.msra.mxu0 0
    %281 = vmatprep.subr.bf16.mxu0 0
    %282 = vmatpush1.bf16.xpose.msra.mxu0 0
    %283 = vmatprep.subr.bf16.mxu0 0
    %284 = vmatpush1.bf16.xpose.msra.mxu0 0
    %285 = vmatprep.subr.bf16.mxu0 0
    %286 = vmatpush1.bf16.xpose.msra.mxu0 0
    %287 = vmatprep.subr.bf16.mxu0 0
    %288 = vmatpush1.bf16.xpose.msra.mxu0 0
    %289 = vmatprep.mubr.bf16.mxu0 0
    %290 = vmatmul.mubr.bf16.gmra.mrb[0].mxu0 %v252
    %v291 = vpop.f32.mrb[0].mxu0
    %v292 = vadd.f32 %v42, %v291
    %v293 = vpop.f32.mrb[0].mxu0
    %v294 = vpop.f32.mrb[0].mxu0
    %v295 = vadd.f32 %v43, %v294
    %v296 = vpop.f32.mrb[0].mxu0
    %297 = vdwg.mxu0
    %v298 = vsel %vm250, %v292, -inf
    %299 = vmax.xlane.f32.xlu0 %v298
    %v300 = vpop.xlane.xlu0 %299
    %v301 = vsel %vm250, %v295, -inf
    %302 = vmax.xlane.f32.xlu0 %v301
    %v303 = vpop.xlane.xlu0 %302
    %v304 = vsub.f32 %v292, %v300
    %v305 = vsub.f32 %v295, %v303
    %v306 = vmul.f32 %v304, 1.442695
    %v307 = vpow.pop %v306
    %v308 = vmul.f32 %v305, 1.442695
    %v309 = vpow.pop %v308
    %v310 = vsel %vm250, %v307, 0.0
    %311 = vadd.xlane.f32.xlu0 %v310
    %v312 = vpop.xlane.xlu0 %311
    %v313 = vsel %vm250, %v309, 0.0
    %314 = vadd.xlane.f32.xlu0 %v313
    %v315 = vpop.xlane.xlu0 %314
    %v316 = vrcp.pop %v312
    %v317 = vmul.f32 %v307, %v316
    %v318 = vrcp.pop %v315
    %v319 = vmul.f32 %v309, %v318
    %v320 = vpack.c.bf16 %v319, %v317
    %v321 = vpack.c.bf16 %v245, %v242
    %v323 = vsel %vm250, %v320, 0
    %325 = vmatprep.subr.bf16.mxu0 0
    %326 = vmatpush1.bf16.msra.mxu0 %v321
    %327 = vmatprep.subr.bf16.mxu0 0
    %328 = vmatpush1.bf16.msra.mxu0 0
    %329 = vmatprep.subr.bf16.mxu0 0
    %330 = vmatpush1.bf16.msra.mxu0 0
    %331 = vmatprep.subr.bf16.mxu0 0
    %332 = vmatpush1.bf16.msra.mxu0 0
    %333 = vmatprep.subr.bf16.mxu0 0
    %334 = vmatpush1.bf16.msra.mxu0 0
    %335 = vmatprep.subr.bf16.mxu0 0
    %336 = vmatpush1.bf16.msra.mxu0 0
    %337 = vmatprep.subr.bf16.mxu0 0
    %338 = vmatpush1.bf16.msra.mxu0 0
    %339 = vmatprep.subr.bf16.mxu0 0
    %340 = vmatpush1.bf16.msra.mxu0 0
    %341 = vmatprep.subr.bf16.mxu0 0
    %342 = vmatpush1.bf16.msra.mxu0 0
    %343 = vmatprep.subr.bf16.mxu0 0
    %344 = vmatpush1.bf16.msra.mxu0 0
    %345 = vmatprep.subr.bf16.mxu0 0
    %346 = vmatpush1.bf16.msra.mxu0 0
    %347 = vmatprep.subr.bf16.mxu0 0
    %348 = vmatpush1.bf16.msra.mxu0 0
    %349 = vmatprep.subr.bf16.mxu0 0
    %350 = vmatpush1.bf16.msra.mxu0 0
    %351 = vmatprep.subr.bf16.mxu0 0
    %352 = vmatpush1.bf16.msra.mxu0 0
    %353 = vmatprep.subr.bf16.mxu0 0
    %354 = vmatpush1.bf16.msra.mxu0 0
    %355 = vmatprep.subr.bf16.mxu0 0
    %356 = vmatpush1.bf16.msra.mxu0 0
    %357 = vmatprep.mubr.bf16.mxu0 0
    %358 = vmatmul.mubr.bf16.gmra.mrb[0].mxu0 %v323
    %v359 = vpop.f32.mrb[0].mxu0
    %v360 = vadd.f32 0.0, %v359
    %v361 = vpop.f32.mrb[0].mxu0
    %v362 = vpop.f32.mrb[0].mxu0
    %v363 = vadd.f32 0.0, %v362
    %v364 = vpop.f32.mrb[0].mxu0
    %365 = vdwg.mxu0
    %v366 = vpack.c.bf16 %v363, %v360
    %v367 = vld [vmem:[%s6] sm:$0xf]
    %v368 = vld [vmem:[%s6 + $0x4] sm:$0xf]
    %s369 = scalar_lea.vmem %s3, 16
    %v370 = vld [vmem:[%s369] sm:$0xf]
    %v371 = vld [vmem:[%s369 + $0x4] sm:$0xf]
    %v372 = vld [vmem:[%s369 + $0x8] sm:$0xf]
    %v373 = vld [vmem:[%s369 + $0xc] sm:$0xf]
    %v378 = vunpack.c.l.b16 %v370
    %v379 = vunpack.c.l.b16 %v371
    %v380 = vunpack.c.l.b16 %v372
    %v381 = vunpack.c.l.b16 %v373
    %v382 = vpack.c.b16 %v379, %v378
    %v383 = vpack.c.b16 %v381, %v380
    %386 = vmatprep.subr.bf16.mxu0 0
    %387 = vmatpush1.bf16.msra.mxu0 %v382
    %388 = vmatprep.subr.bf16.mxu0 0
    %389 = vmatpush1.bf16.msra.mxu0 %v383
    %390 = vmatprep.subr.bf16.mxu0 0
    %391 = vmatpush1.bf16.msra.mxu0 0
    %392 = vmatprep.subr.bf16.mxu0 0
    %393 = vmatpush1.bf16.msra.mxu0 0
    %394 = vmatprep.subr.bf16.mxu0 0
    %395 = vmatpush1.bf16.msra.mxu0 0
    %396 = vmatprep.subr.bf16.mxu0 0
    %397 = vmatpush1.bf16.msra.mxu0 0
    %398 = vmatprep.subr.bf16.mxu0 0
    %399 = vmatpush1.bf16.msra.mxu0 0
    %400 = vmatprep.subr.bf16.mxu0 0
    %401 = vmatpush1.bf16.msra.mxu0 0
    %402 = vmatprep.subr.bf16.mxu0 0
    %403 = vmatpush1.bf16.msra.mxu0 0
    %404 = vmatprep.subr.bf16.mxu0 0
    %405 = vmatpush1.bf16.msra.mxu0 0
    %406 = vmatprep.subr.bf16.mxu0 0
    %407 = vmatpush1.bf16.msra.mxu0 0
    %408 = vmatprep.subr.bf16.mxu0 0
    %409 = vmatpush1.bf16.msra.mxu0 0
    %410 = vmatprep.subr.bf16.mxu0 0
    %411 = vmatpush1.bf16.msra.mxu0 0
    %412 = vmatprep.subr.bf16.mxu0 0
    %413 = vmatpush1.bf16.msra.mxu0 0
    %414 = vmatprep.subr.bf16.mxu0 0
    %415 = vmatpush1.bf16.msra.mxu0 0
    %416 = vmatprep.subr.bf16.mxu0 0
    %417 = vmatpush1.bf16.msra.mxu0 0
    %418 = vmatprep.mubr.bf16.mxu0 0
    %419 = vmatmul.mubr.bf16.gmra.mrb[0].mxu0 %v91
    %v420 = vpop.f32.mrb[0].mxu0
    %v421 = vadd.f32 0.0, %v420
    %v422 = vpop.f32.mrb[0].mxu0
    %v423 = vpop.f32.mrb[0].mxu0
    %v424 = vadd.f32 0.0, %v423
    %v425 = vpop.f32.mrb[0].mxu0
    %426 = vdwg.mxu0
    %s427 = scalar_lea.vmem %s4, 16
    %v428 = vld [vmem:[%s427] sm:$0xf]
    %v429 = vld [vmem:[%s427 + $0x4] sm:$0xf]
    %v430 = vld [vmem:[%s427 + $0x8] sm:$0xf]
    %v431 = vld [vmem:[%s427 + $0xc] sm:$0xf]
    %v436 = vunpack.c.l.b16 %v428
    %v437 = vunpack.c.l.b16 %v429
    %v438 = vunpack.c.l.b16 %v430
    %v439 = vunpack.c.l.b16 %v431
    %v440 = vpack.c.b16 %v437, %v436
    %v441 = vpack.c.b16 %v439, %v438
    %444 = vmatprep.subr.bf16.mxu0 0
    %445 = vmatpush1.bf16.msra.mxu0 %v440
    %446 = vmatprep.subr.bf16.mxu0 0
    %447 = vmatpush1.bf16.msra.mxu0 %v441
    %448 = vmatprep.subr.bf16.mxu0 0
    %449 = vmatpush1.bf16.msra.mxu0 0
    %450 = vmatprep.subr.bf16.mxu0 0
    %451 = vmatpush1.bf16.msra.mxu0 0
    %452 = vmatprep.subr.bf16.mxu0 0
    %453 = vmatpush1.bf16.msra.mxu0 0
    %454 = vmatprep.subr.bf16.mxu0 0
    %455 = vmatpush1.bf16.msra.mxu0 0
    %456 = vmatprep.subr.bf16.mxu0 0
    %457 = vmatpush1.bf16.msra.mxu0 0
    %458 = vmatprep.subr.bf16.mxu0 0
    %459 = vmatpush1.bf16.msra.mxu0 0
    %460 = vmatprep.subr.bf16.mxu0 0
    %461 = vmatpush1.bf16.msra.mxu0 0
    %462 = vmatprep.subr.bf16.mxu0 0
    %463 = vmatpush1.bf16.msra.mxu0 0
    %464 = vmatprep.subr.bf16.mxu0 0
    %465 = vmatpush1.bf16.msra.mxu0 0
    %466 = vmatprep.subr.bf16.mxu0 0
    %467 = vmatpush1.bf16.msra.mxu0 0
    %468 = vmatprep.subr.bf16.mxu0 0
    %469 = vmatpush1.bf16.msra.mxu0 0
    %470 = vmatprep.subr.bf16.mxu0 0
    %471 = vmatpush1.bf16.msra.mxu0 0
    %472 = vmatprep.subr.bf16.mxu0 0
    %473 = vmatpush1.bf16.msra.mxu0 0
    %474 = vmatprep.subr.bf16.mxu0 0
    %475 = vmatpush1.bf16.msra.mxu0 0
    %476 = vmatprep.mubr.bf16.mxu0 0
    %477 = vmatmul.mubr.bf16.gmra.mrb[0].mxu0 %v91
    %v478 = vpop.f32.mrb[0].mxu0
    %v479 = vadd.f32 0.0, %v478
    %v480 = vpop.f32.mrb[0].mxu0
    %v481 = vpop.f32.mrb[0].mxu0
    %v482 = vadd.f32 0.0, %v481
    %v483 = vpop.f32.mrb[0].mxu0
    %484 = vdwg.mxu0
    %s485 = scalar_lea.vmem %s5, 16
    %v486 = vld [vmem:[%s485] sm:$0xf]
    %v487 = vld [vmem:[%s485 + $0x4] sm:$0xf]
    %v488 = vld [vmem:[%s485 + $0x8] sm:$0xf]
    %v489 = vld [vmem:[%s485 + $0xc] sm:$0xf]
    %v494 = vunpack.c.l.b16 %v486
    %v495 = vunpack.c.l.b16 %v487
    %v496 = vunpack.c.l.b16 %v488
    %v497 = vunpack.c.l.b16 %v489
    %v498 = vpack.c.b16 %v495, %v494
    %v499 = vpack.c.b16 %v497, %v496
    %502 = vmatprep.subr.bf16.mxu0 0
    %503 = vmatpush1.bf16.msra.mxu0 %v498
    %504 = vmatprep.subr.bf16.mxu0 0
    %505 = vmatpush1.bf16.msra.mxu0 %v499
    %506 = vmatprep.subr.bf16.mxu0 0
    %507 = vmatpush1.bf16.msra.mxu0 0
    %508 = vmatprep.subr.bf16.mxu0 0
    %509 = vmatpush1.bf16.msra.mxu0 0
    %510 = vmatprep.subr.bf16.mxu0 0
    %511 = vmatpush1.bf16.msra.mxu0 0
    %512 = vmatprep.subr.bf16.mxu0 0
    %513 = vmatpush1.bf16.msra.mxu0 0
    %514 = vmatprep.subr.bf16.mxu0 0
    %515 = vmatpush1.bf16.msra.mxu0 0
    %516 = vmatprep.subr.bf16.mxu0 0
    %517 = vmatpush1.bf16.msra.mxu0 0
    %518 = vmatprep.subr.bf16.mxu0 0
    %519 = vmatpush1.bf16.msra.mxu0 0
    %520 = vmatprep.subr.bf16.mxu0 0
    %521 = vmatpush1.bf16.msra.mxu0 0
    %522 = vmatprep.subr.bf16.mxu0 0
    %523 = vmatpush1.bf16.msra.mxu0 0
    %524 = vmatprep.subr.bf16.mxu0 0
    %525 = vmatpush1.bf16.msra.mxu0 0
    %526 = vmatprep.subr.bf16.mxu0 0
    %527 = vmatpush1.bf16.msra.mxu0 0
    %528 = vmatprep.subr.bf16.mxu0 0
    %529 = vmatpush1.bf16.msra.mxu0 0
    %530 = vmatprep.subr.bf16.mxu0 0
    %531 = vmatpush1.bf16.msra.mxu0 0
    %532 = vmatprep.subr.bf16.mxu0 0
    %533 = vmatpush1.bf16.msra.mxu0 0
    %534 = vmatprep.mubr.bf16.mxu0 0
    %535 = vmatmul.mubr.bf16.gmra.mrb[0].mxu0 %v91
    %v536 = vpop.f32.mrb[0].mxu0
    %v537 = vadd.f32 0.0, %v536
    %v538 = vpop.f32.mrb[0].mxu0
    %v539 = vpop.f32.mrb[0].mxu0
    %v540 = vadd.f32 0.0, %v539
    %v541 = vpop.f32.mrb[0].mxu0
    %542 = vdwg.mxu0
    %v543 = vpack.c.bf16 %v424, %v421
    %v544 = vpack.c.bf16 %v482, %v479
    %v546 = vsel %vm250, %v543, 0
    %v549 = vsel %vm250, %v544, 0
    %551 = vmatprep.subr.bf16.mxu0 0
    %552 = vmatpush1.bf16.xpose.msra.mxu0 %v549
    %553 = vmatprep.subr.bf16.mxu0 0
    %554 = vmatpush1.bf16.xpose.msra.mxu0 0
    %555 = vmatprep.subr.bf16.mxu0 0
    %556 = vmatpush1.bf16.xpose.msra.mxu0 0
    %557 = vmatprep.subr.bf16.mxu0 0
    %558 = vmatpush1.bf16.xpose.msra.mxu0 0
    %559 = vmatprep.subr.bf16.mxu0 0
    %560 = vmatpush1.bf16.xpose.msra.mxu0 0
    %561 = vmatprep.subr.bf16.mxu0 0
    %562 = vmatpush1.bf16.xpose.msra.mxu0 0
    %563 = vmatprep.subr.bf16.mxu0 0
    %564 = vmatpush1.bf16.xpose.msra.mxu0 0
    %565 = vmatprep.subr.bf16.mxu0 0
    %566 = vmatpush1.bf16.xpose.msra.mxu0 0
    %567 = vmatprep.subr.bf16.mxu0 0
    %568 = vmatpush1.bf16.xpose.msra.mxu0 0
    %569 = vmatprep.subr.bf16.mxu0 0
    %570 = vmatpush1.bf16.xpose.msra.mxu0 0
    %571 = vmatprep.subr.bf16.mxu0 0
    %572 = vmatpush1.bf16.xpose.msra.mxu0 0
    %573 = vmatprep.subr.bf16.mxu0 0
    %574 = vmatpush1.bf16.xpose.msra.mxu0 0
    %575 = vmatprep.subr.bf16.mxu0 0
    %576 = vmatpush1.bf16.xpose.msra.mxu0 0
    %577 = vmatprep.subr.bf16.mxu0 0
    %578 = vmatpush1.bf16.xpose.msra.mxu0 0
    %579 = vmatprep.subr.bf16.mxu0 0
    %580 = vmatpush1.bf16.xpose.msra.mxu0 0
    %581 = vmatprep.subr.bf16.mxu0 0
    %582 = vmatpush1.bf16.xpose.msra.mxu0 0
    %583 = vmatprep.mubr.bf16.mxu0 0
    %584 = vmatmul.mubr.bf16.gmra.mrb[0].mxu0 %v546
    %v585 = vpop.f32.mrb[0].mxu0
    %v586 = vadd.f32 %v44, %v585
    %v587 = vpop.f32.mrb[0].mxu0
    %v588 = vpop.f32.mrb[0].mxu0
    %v589 = vadd.f32 %v45, %v588
    %v590 = vpop.f32.mrb[0].mxu0
    %591 = vdwg.mxu0
    %v592 = vsel %vm250, %v586, -inf
    %593 = vmax.xlane.f32.xlu0 %v592
    %v594 = vpop.xlane.xlu0 %593
    %v595 = vsel %vm250, %v589, -inf
    %596 = vmax.xlane.f32.xlu0 %v595
    %v597 = vpop.xlane.xlu0 %596
    %v598 = vsub.f32 %v586, %v594
    %v599 = vsub.f32 %v589, %v597
    %v600 = vmul.f32 %v598, 1.442695
    %v601 = vpow.pop %v600
    %v602 = vmul.f32 %v599, 1.442695
    %v603 = vpow.pop %v602
    %v604 = vsel %vm250, %v601, 0.0
    %605 = vadd.xlane.f32.xlu0 %v604
    %v606 = vpop.xlane.xlu0 %605
    %v607 = vsel %vm250, %v603, 0.0
    %608 = vadd.xlane.f32.xlu0 %v607
    %v609 = vpop.xlane.xlu0 %608
    %v610 = vrcp.pop %v606
    %v611 = vmul.f32 %v601, %v610
    %v612 = vrcp.pop %v609
    %v613 = vmul.f32 %v603, %v612
    %v614 = vpack.c.bf16 %v613, %v611
    %v615 = vpack.c.bf16 %v540, %v537
    %v617 = vsel %vm250, %v614, 0
    %619 = vmatprep.subr.bf16.mxu0 0
    %620 = vmatpush1.bf16.msra.mxu0 %v615
    %621 = vmatprep.subr.bf16.mxu0 0
    %622 = vmatpush1.bf16.msra.mxu0 0
    %623 = vmatprep.subr.bf16.mxu0 0
    %624 = vmatpush1.bf16.msra.mxu0 0
    %625 = vmatprep.subr.bf16.mxu0 0
    %626 = vmatpush1.bf16.msra.mxu0 0
    %627 = vmatprep.subr.bf16.mxu0 0
    %628 = vmatpush1.bf16.msra.mxu0 0
    %629 = vmatprep.subr.bf16.mxu0 0
    %630 = vmatpush1.bf16.msra.mxu0 0
    %631 = vmatprep.subr.bf16.mxu0 0
    %632 = vmatpush1.bf16.msra.mxu0 0
    %633 = vmatprep.subr.bf16.mxu0 0
    %634 = vmatpush1.bf16.msra.mxu0 0
    %635 = vmatprep.subr.bf16.mxu0 0
    %636 = vmatpush1.bf16.msra.mxu0 0
    %637 = vmatprep.subr.bf16.mxu0 0
    %638 = vmatpush1.bf16.msra.mxu0 0
    %639 = vmatprep.subr.bf16.mxu0 0
    %640 = vmatpush1.bf16.msra.mxu0 0
    %641 = vmatprep.subr.bf16.mxu0 0
    %642 = vmatpush1.bf16.msra.mxu0 0
    %643 = vmatprep.subr.bf16.mxu0 0
    %644 = vmatpush1.bf16.msra.mxu0 0
    %645 = vmatprep.subr.bf16.mxu0 0
    %646 = vmatpush1.bf16.msra.mxu0 0
    %647 = vmatprep.subr.bf16.mxu0 0
    %648 = vmatpush1.bf16.msra.mxu0 0
    %649 = vmatprep.subr.bf16.mxu0 0
    %650 = vmatpush1.bf16.msra.mxu0 0
    %651 = vmatprep.mubr.bf16.mxu0 0
    %652 = vmatmul.mubr.bf16.gmra.mrb[0].mxu0 %v617
    %v653 = vpop.f32.mrb[0].mxu0
    %v654 = vadd.f32 0.0, %v653
    %v655 = vpop.f32.mrb[0].mxu0
    %v656 = vpop.f32.mrb[0].mxu0
    %v657 = vadd.f32 0.0, %v656
    %v658 = vpop.f32.mrb[0].mxu0
    %659 = vdwg.mxu0
    %v660 = vpack.c.bf16 %v657, %v654
    %s661 = scalar_lea.vmem %s6, 8
    %v662 = vld [vmem:[%s661] sm:$0xf]
    %v663 = vld [vmem:[%s661 + $0x4] sm:$0xf]
    %v666 = vunpack.c.l.b16 %v662
    %v667 = vunpack.c.l.b16 %v663
    %v668 = vpack.c.b16 %v667, %v666
    %v671 = vsel %vm250, %v660, 0
    %673 = vmatprep.subr.bf16.mxu0 0
    %674 = vmatpush1.bf16.msra.mxu0 %v668
    %675 = vmatprep.subr.bf16.mxu0 0
    %676 = vmatpush1.bf16.msra.mxu0 0
    %677 = vmatprep.subr.bf16.mxu0 0
    %678 = vmatpush1.bf16.msra.mxu0 0
    %679 = vmatprep.subr.bf16.mxu0 0
    %680 = vmatpush1.bf16.msra.mxu0 0
    %681 = vmatprep.subr.bf16.mxu0 0
    %682 = vmatpush1.bf16.msra.mxu0 0
    %683 = vmatprep.subr.bf16.mxu0 0
    %684 = vmatpush1.bf16.msra.mxu0 0
    %685 = vmatprep.subr.bf16.mxu0 0
    %686 = vmatpush1.bf16.msra.mxu0 0
    %687 = vmatprep.subr.bf16.mxu0 0
    %688 = vmatpush1.bf16.msra.mxu0 0
    %689 = vmatprep.subr.bf16.mxu0 0
    %690 = vmatpush1.bf16.msra.mxu0 0
    %691 = vmatprep.subr.bf16.mxu0 0
    %692 = vmatpush1.bf16.msra.mxu0 0
    %693 = vmatprep.subr.bf16.mxu0 0
    %694 = vmatpush1.bf16.msra.mxu0 0
    %695 = vmatprep.subr.bf16.mxu0 0
    %696 = vmatpush1.bf16.msra.mxu0 0
    %697 = vmatprep.subr.bf16.mxu0 0
    %698 = vmatpush1.bf16.msra.mxu0 0
    %699 = vmatprep.subr.bf16.mxu0 0
    %700 = vmatpush1.bf16.msra.mxu0 0
    %701 = vmatprep.subr.bf16.mxu0 0
    %702 = vmatpush1.bf16.msra.mxu0 0
    %703 = vmatprep.subr.bf16.mxu0 0
    %704 = vmatpush1.bf16.msra.mxu0 0
    %705 = vmatprep.mubr.bf16.mxu0 0
    %706 = vmatmul.mubr.bf16.gmra.mrb[0].mxu0 %v671
    %v707 = vpop.f32.mrb[0].mxu0
    %v708 = vadd.f32 0.0, %v707
    %v709 = vpop.f32.mrb[0].mxu0
    %v710 = vpop.f32.mrb[0].mxu0
    %v711 = vadd.f32 0.0, %v710
    %v712 = vpop.f32.mrb[0].mxu0
    %713 = vdwg.mxu0
    %v716 = vunpack.c.l.b16 %v367
    %v717 = vunpack.c.l.b16 %v368
    %v718 = vpack.c.b16 %v717, %v716
    %v721 = vsel %vm250, %v366, 0
    %723 = vmatprep.subr.bf16.mxu0 0
    %724 = vmatpush1.bf16.msra.mxu0 %v718
    %725 = vmatprep.subr.bf16.mxu0 0
    %726 = vmatpush1.bf16.msra.mxu0 0
    %727 = vmatprep.subr.bf16.mxu0 0
    %728 = vmatpush1.bf16.msra.mxu0 0
    %729 = vmatprep.subr.bf16.mxu0 0
    %730 = vmatpush1.bf16.msra.mxu0 0
    %731 = vmatprep.subr.bf16.mxu0 0
    %732 = vmatpush1.bf16.msra.mxu0 0
    %733 = vmatprep.subr.bf16.mxu0 0
    %734 = vmatpush1.bf16.msra.mxu0 0
    %735 = vmatprep.subr.bf16.mxu0 0
    %736 = vmatpush1.bf16.msra.mxu0 0
    %737 = vmatprep.subr.bf16.mxu0 0
    %738 = vmatpush1.bf16.msra.mxu0 0
    %739 = vmatprep.subr.bf16.mxu0 0
    %740 = vmatpush1.bf16.msra.mxu0 0
    %741 = vmatprep.subr.bf16.mxu0 0
    %742 = vmatpush1.bf16.msra.mxu0 0
    %743 = vmatprep.subr.bf16.mxu0 0
    %744 = vmatpush1.bf16.msra.mxu0 0
    %745 = vmatprep.subr.bf16.mxu0 0
    %746 = vmatpush1.bf16.msra.mxu0 0
    %747 = vmatprep.subr.bf16.mxu0 0
    %748 = vmatpush1.bf16.msra.mxu0 0
    %749 = vmatprep.subr.bf16.mxu0 0
    %750 = vmatpush1.bf16.msra.mxu0 0
    %751 = vmatprep.subr.bf16.mxu0 0
    %752 = vmatpush1.bf16.msra.mxu0 0
    %753 = vmatprep.subr.bf16.mxu0 0
    %754 = vmatpush1.bf16.msra.mxu0 0
    %755 = vmatprep.mubr.bf16.mxu0 0
    %756 = vmatmul.mubr.bf16.gmra.mrb[0].mxu0 %v721
    %v757 = vpop.f32.mrb[0].mxu0
    %v758 = vadd.f32 %v708, %v757
    %v759 = vpop.f32.mrb[0].mxu0
    %v760 = vpop.f32.mrb[0].mxu0
    %v761 = vadd.f32 %v711, %v760
    %v762 = vpop.f32.mrb[0].mxu0
    %763 = vdwg.mxu0
    %v764 = vadd.f32 %v40, %v758
    %v765 = vadd.f32 %v41, %v761
    %v766 = vld [vmem:[%s7] sm:$0x1]
    %v767 = vmul.f32 %v764, %v764
    %v768 = vmul.f32 %v765, %v765
    %v769 = vsel %vm49, %v767, 0.0
    %770 = vadd.xlane.f32.xlu0 %v769
    %v771 = vpop.xlane.xlu0 %770
    %v772 = vsel %vm49, %v768, 0.0
    %773 = vadd.xlane.f32.xlu0 %v772
    %v774 = vpop.xlane.xlu0 %773
    %v775 = vmul.f32 %v771, %v56
    %v776 = vmul.f32 %v774, %v56
    %v777 = vadd.f32 %v775, 1e-06
    %v778 = vadd.f32 %v776, 1e-06
    %v779 = vrsqrt.pop %v777
    %v780 = vrsqrt.pop %v778
    %v781 = vmul.f32 %v764, %v779
    %v782 = vmul.f32 %v765, %v780
    %v784 = vlaneseq
    %v785 = vshrl.u32 %v784, 7
    %v786 = vsub.s32 0, %v785
    %v787 = vrot.slane %v766, %v786
    %v789 = vmul.f32 %v781, %v787
    %v790 = vmul.f32 %v782, %v787
    %v791 = vpack.c.bf16 %v790, %v789
    %v792 = vld [vmem:[%s8] sm:$0xf]
    %v793 = vld [vmem:[%s8 + $0x4] sm:$0xf]
    %v794 = vld [vmem:[%s8 + $0x8] sm:$0xf]
    %v795 = vld [vmem:[%s8 + $0xc] sm:$0xf]
    %v800 = vunpack.c.l.b16 %v792
    %v801 = vunpack.c.l.b16 %v793
    %v802 = vunpack.c.l.b16 %v794
    %v803 = vunpack.c.l.b16 %v795
    %v804 = vpack.c.b16 %v801, %v800
    %v805 = vpack.c.b16 %v803, %v802
    %v809 = vsel %vm49, %v791, 0
    %811 = vmatprep.subr.bf16.mxu0 0
    %812 = vmatpush1.bf16.msra.mxu0 %v804
    %813 = vmatprep.subr.bf16.mxu0 0
    %814 = vmatpush1.bf16.msra.mxu0 %v805
    %815 = vmatprep.subr.bf16.mxu0 0
    %816 = vmatpush1.bf16.msra.mxu0 0
    %817 = vmatprep.subr.bf16.mxu0 0
    %818 = vmatpush1.bf16.msra.mxu0 0
    %819 = vmatprep.subr.bf16.mxu0 0
    %820 = vmatpush1.bf16.msra.mxu0 0
    %821 = vmatprep.subr.bf16.mxu0 0
    %822 = vmatpush1.bf16.msra.mxu0 0
    %823 = vmatprep.subr.bf16.mxu0 0
    %824 = vmatpush1.bf16.msra.mxu0 0
    %825 = vmatprep.subr.bf16.mxu0 0
    %826 = vmatpush1.bf16.msra.mxu0 0
    %827 = vmatprep.subr.bf16.mxu0 0
    %828 = vmatpush1.bf16.msra.mxu0 0
    %829 = vmatprep.subr.bf16.mxu0 0
    %830 = vmatpush1.bf16.msra.mxu0 0
    %831 = vmatprep.subr.bf16.mxu0 0
    %832 = vmatpush1.bf16.msra.mxu0 0
    %833 = vmatprep.subr.bf16.mxu0 0
    %834 = vmatpush1.bf16.msra.mxu0 0
    %835 = vmatprep.subr.bf16.mxu0 0
    %836 = vmatpush1.bf16.msra.mxu0 0
    %837 = vmatprep.subr.bf16.mxu0 0
    %838 = vmatpush1.bf16.msra.mxu0 0
    %839 = vmatprep.subr.bf16.mxu0 0
    %840 = vmatpush1.bf16.msra.mxu0 0
    %841 = vmatprep.subr.bf16.mxu0 0
    %842 = vmatpush1.bf16.msra.mxu0 0
    %843 = vmatprep.mubr.bf16.mxu0 0
    %844 = vmatmul.mubr.bf16.gmra.mrb[0].mxu0 %v809
    %v845 = vpop.f32.mrb[0].mxu0
    %v846 = vadd.f32 0.0, %v845
    %v847 = vpop.f32.mrb[0].mxu0
    %v848 = vpop.f32.mrb[0].mxu0
    %v849 = vadd.f32 0.0, %v848
    %v850 = vpop.f32.mrb[0].mxu0
    %851 = vdwg.mxu0
    %v852 = vmax.f32 %v846, 0.0
    %v853 = vmax.f32 %v849, 0.0
    %v854 = vpack.c.bf16 %v853, %v852
    %v855 = vld [vmem:[%s9] sm:$0xf]
    %v856 = vld [vmem:[%s9 + $0x4] sm:$0xf]
    %v857 = vld [vmem:[%s9 + $0x8] sm:$0xf]
    %v858 = vld [vmem:[%s9 + $0xc] sm:$0xf]
    %v859 = vld [vmem:[%s9 + $0x10] sm:$0xf]
    %v860 = vld [vmem:[%s9 + $0x14] sm:$0xf]
    %v861 = vld [vmem:[%s9 + $0x18] sm:$0xf]
    %v862 = vld [vmem:[%s9 + $0x1c] sm:$0xf]
    %v871 = vunpack.c.l.b16 %v855
    %v872 = vunpack.c.l.b16 %v856
    %v873 = vunpack.c.l.b16 %v857
    %v874 = vunpack.c.l.b16 %v858
    %v875 = vunpack.c.l.b16 %v859
    %v876 = vunpack.c.l.b16 %v860
    %v877 = vunpack.c.l.b16 %v861
    %v878 = vunpack.c.l.b16 %v862
    %v879 = vpack.c.b16 %v872, %v871
    %v880 = vpack.c.b16 %v874, %v873
    %v881 = vpack.c.b16 %v876, %v875
    %v882 = vpack.c.b16 %v878, %v877
    %vm887 = vcmask 523264
    %v889 = vsel %vm887, %v854, 0
    %891 = vmatprep.subr.bf16.mxu0 0
    %892 = vmatpush1.bf16.msra.mxu0 %v879
    %893 = vmatprep.subr.bf16.mxu0 0
    %894 = vmatpush1.bf16.msra.mxu0 %v880
    %895 = vmatprep.subr.bf16.mxu0 0
    %896 = vmatpush1.bf16.msra.mxu0 %v881
    %897 = vmatprep.subr.bf16.mxu0 0
    %898 = vmatpush1.bf16.msra.mxu0 %v882
    %899 = vmatprep.subr.bf16.mxu0 0
    %900 = vmatpush1.bf16.msra.mxu0 0
    %901 = vmatprep.subr.bf16.mxu0 0
    %902 = vmatpush1.bf16.msra.mxu0 0
    %903 = vmatprep.subr.bf16.mxu0 0
    %904 = vmatpush1.bf16.msra.mxu0 0
    %905 = vmatprep.subr.bf16.mxu0 0
    %906 = vmatpush1.bf16.msra.mxu0 0
    %907 = vmatprep.subr.bf16.mxu0 0
    %908 = vmatpush1.bf16.msra.mxu0 0
    %909 = vmatprep.subr.bf16.mxu0 0
    %910 = vmatpush1.bf16.msra.mxu0 0
    %911 = vmatprep.subr.bf16.mxu0 0
    %912 = vmatpush1.bf16.msra.mxu0 0
    %913 = vmatprep.subr.bf16.mxu0 0
    %914 = vmatpush1.bf16.msra.mxu0 0
    %915 = vmatprep.subr.bf16.mxu0 0
    %916 = vmatpush1.bf16.msra.mxu0 0
    %917 = vmatprep.subr.bf16.mxu0 0
    %918 = vmatpush1.bf16.msra.mxu0 0
    %919 = vmatprep.subr.bf16.mxu0 0
    %920 = vmatpush1.bf16.msra.mxu0 0
    %921 = vmatprep.subr.bf16.mxu0 0
    %922 = vmatpush1.bf16.msra.mxu0 0
    %923 = vmatprep.mubr.bf16.mxu0 0
    %924 = vmatmul.mubr.bf16.gmra.mrb[0].mxu0 %v889
    %v925 = vpop.f32.mrb[0].mxu0
    %v926 = vadd.f32 0.0, %v925
    %v927 = vpop.f32.mrb[0].mxu0
    %v928 = vpop.f32.mrb[0].mxu0
    %v929 = vadd.f32 0.0, %v928
    %v930 = vpop.f32.mrb[0].mxu0
    %931 = vdwg.mxu0
    %v932 = vadd.f32 %v764, %v926
    %v933 = vadd.f32 %v765, %v929
    %s934 = scalar_lea.vmem %s2, 1
    %v935 = vld [vmem:[%s934] sm:$0x1]
    %v936 = vmul.f32 %v932, %v932
    %v937 = vmul.f32 %v933, %v933
    %v938 = vsel %vm49, %v936, 0.0
    %939 = vadd.xlane.f32.xlu0 %v938
    %v940 = vpop.xlane.xlu0 %939
    %v941 = vsel %vm49, %v937, 0.0
    %942 = vadd.xlane.f32.xlu0 %v941
    %v943 = vpop.xlane.xlu0 %942
    %v944 = vmul.f32 %v940, %v56
    %v945 = vmul.f32 %v943, %v56
    %v946 = vadd.f32 %v944, 1e-06
    %v947 = vadd.f32 %v945, 1e-06
    %v948 = vrsqrt.pop %v946
    %v949 = vrsqrt.pop %v947
    %v950 = vmul.f32 %v932, %v948
    %v951 = vmul.f32 %v933, %v949
    %v953 = vlaneseq
    %v954 = vshrl.u32 %v953, 7
    %v955 = vsub.s32 0, %v954
    %v956 = vrot.slane %v935, %v955
    %v958 = vmul.f32 %v950, %v956
    %v959 = vmul.f32 %v951, %v956
    %v960 = vpack.c.bf16 %v959, %v958
    %s961 = scalar_lea.vmem %s3, 32
    %v962 = vld [vmem:[%s961] sm:$0xf]
    %v963 = vld [vmem:[%s961 + $0x4] sm:$0xf]
    %v964 = vld [vmem:[%s961 + $0x8] sm:$0xf]
    %v965 = vld [vmem:[%s961 + $0xc] sm:$0xf]
    %v970 = vunpack.c.l.b16 %v962
    %v971 = vunpack.c.l.b16 %v963
    %v972 = vunpack.c.l.b16 %v964
    %v973 = vunpack.c.l.b16 %v965
    %v974 = vpack.c.b16 %v971, %v970
    %v975 = vpack.c.b16 %v973, %v972
    %v979 = vsel %vm49, %v960, 0
    %981 = vmatprep.subr.bf16.mxu0 0
    %982 = vmatpush1.bf16.msra.mxu0 %v974
    %983 = vmatprep.subr.bf16.mxu0 0
    %984 = vmatpush1.bf16.msra.mxu0 %v975
    %985 = vmatprep.subr.bf16.mxu0 0
    %986 = vmatpush1.bf16.msra.mxu0 0
    %987 = vmatprep.subr.bf16.mxu0 0
    %988 = vmatpush1.bf16.msra.mxu0 0
    %989 = vmatprep.subr.bf16.mxu0 0
    %990 = vmatpush1.bf16.msra.mxu0 0
    %991 = vmatprep.subr.bf16.mxu0 0
    %992 = vmatpush1.bf16.msra.mxu0 0
    %993 = vmatprep.subr.bf16.mxu0 0
    %994 = vmatpush1.bf16.msra.mxu0 0
    %995 = vmatprep.subr.bf16.mxu0 0
    %996 = vmatpush1.bf16.msra.mxu0 0
    %997 = vmatprep.subr.bf16.mxu0 0
    %998 = vmatpush1.bf16.msra.mxu0 0
    %999 = vmatprep.subr.bf16.mxu0 0
    %1000 = vmatpush1.bf16.msra.mxu0 0
    %1001 = vmatprep.subr.bf16.mxu0 0
    %1002 = vmatpush1.bf16.msra.mxu0 0
    %1003 = vmatprep.subr.bf16.mxu0 0
    %1004 = vmatpush1.bf16.msra.mxu0 0
    %1005 = vmatprep.subr.bf16.mxu0 0
    %1006 = vmatpush1.bf16.msra.mxu0 0
    %1007 = vmatprep.subr.bf16.mxu0 0
    %1008 = vmatpush1.bf16.msra.mxu0 0
    %1009 = vmatprep.subr.bf16.mxu0 0
    %1010 = vmatpush1.bf16.msra.mxu0 0
    %1011 = vmatprep.subr.bf16.mxu0 0
    %1012 = vmatpush1.bf16.msra.mxu0 0
    %1013 = vmatprep.mubr.bf16.mxu0 0
    %1014 = vmatmul.mubr.bf16.gmra.mrb[0].mxu0 %v979
    %v1015 = vpop.f32.mrb[0].mxu0
    %v1016 = vadd.f32 0.0, %v1015
    %v1017 = vpop.f32.mrb[0].mxu0
    %v1018 = vpop.f32.mrb[0].mxu0
    %v1019 = vadd.f32 0.0, %v1018
    %v1020 = vpop.f32.mrb[0].mxu0
    %1021 = vdwg.mxu0
    %s1022 = scalar_lea.vmem %s4, 32
    %v1023 = vld [vmem:[%s1022] sm:$0xf]
    %v1024 = vld [vmem:[%s1022 + $0x4] sm:$0xf]
    %v1025 = vld [vmem:[%s1022 + $0x8] sm:$0xf]
    %v1026 = vld [vmem:[%s1022 + $0xc] sm:$0xf]
    %v1031 = vunpack.c.l.b16 %v1023
    %v1032 = vunpack.c.l.b16 %v1024
    %v1033 = vunpack.c.l.b16 %v1025
    %v1034 = vunpack.c.l.b16 %v1026
    %v1035 = vpack.c.b16 %v1032, %v1031
    %v1036 = vpack.c.b16 %v1034, %v1033
    %1039 = vmatprep.subr.bf16.mxu0 0
    %1040 = vmatpush1.bf16.msra.mxu0 %v1035
    %1041 = vmatprep.subr.bf16.mxu0 0
    %1042 = vmatpush1.bf16.msra.mxu0 %v1036
    %1043 = vmatprep.subr.bf16.mxu0 0
    %1044 = vmatpush1.bf16.msra.mxu0 0
    %1045 = vmatprep.subr.bf16.mxu0 0
    %1046 = vmatpush1.bf16.msra.mxu0 0
    %1047 = vmatprep.subr.bf16.mxu0 0
    %1048 = vmatpush1.bf16.msra.mxu0 0
    %1049 = vmatprep.subr.bf16.mxu0 0
    %1050 = vmatpush1.bf16.msra.mxu0 0
    %1051 = vmatprep.subr.bf16.mxu0 0
    %1052 = vmatpush1.bf16.msra.mxu0 0
    %1053 = vmatprep.subr.bf16.mxu0 0
    %1054 = vmatpush1.bf16.msra.mxu0 0
    %1055 = vmatprep.subr.bf16.mxu0 0
    %1056 = vmatpush1.bf16.msra.mxu0 0
    %1057 = vmatprep.subr.bf16.mxu0 0
    %1058 = vmatpush1.bf16.msra.mxu0 0
    %1059 = vmatprep.subr.bf16.mxu0 0
    %1060 = vmatpush1.bf16.msra.mxu0 0
    %1061 = vmatprep.subr.bf16.mxu0 0
    %1062 = vmatpush1.bf16.msra.mxu0 0
    %1063 = vmatprep.subr.bf16.mxu0 0
    %1064 = vmatpush1.bf16.msra.mxu0 0
    %1065 = vmatprep.subr.bf16.mxu0 0
    %1066 = vmatpush1.bf16.msra.mxu0 0
    %1067 = vmatprep.subr.bf16.mxu0 0
    %1068 = vmatpush1.bf16.msra.mxu0 0
    %1069 = vmatprep.subr.bf16.mxu0 0
    %1070 = vmatpush1.bf16.msra.mxu0 0
    %1071 = vmatprep.mubr.bf16.mxu0 0
    %1072 = vmatmul.mubr.bf16.gmra.mrb[0].mxu0 %v979
    %v1073 = vpop.f32.mrb[0].mxu0
    %v1074 = vadd.f32 0.0, %v1073
    %v1075 = vpop.f32.mrb[0].mxu0
    %v1076 = vpop.f32.mrb[0].mxu0
    %v1077 = vadd.f32 0.0, %v1076
    %v1078 = vpop.f32.mrb[0].mxu0
    %1079 = vdwg.mxu0
    %s1080 = scalar_lea.vmem %s5, 32
    %v1081 = vld [vmem:[%s1080] sm:$0xf]
    %v1082 = vld [vmem:[%s1080 + $0x4] sm:$0xf]
    %v1083 = vld [vmem:[%s1080 + $0x8] sm:$0xf]
    %v1084 = vld [vmem:[%s1080 + $0xc] sm:$0xf]
    %v1089 = vunpack.c.l.b16 %v1081
    %v1090 = vunpack.c.l.b16 %v1082
    %v1091 = vunpack.c.l.b16 %v1083
    %v1092 = vunpack.c.l.b16 %v1084
    %v1093 = vpack.c.b16 %v1090, %v1089
    %v1094 = vpack.c.b16 %v1092, %v1091
    %1097 = vmatprep.subr.bf16.mxu0 0
    %1098 = vmatpush1.bf16.msra.mxu0 %v1093
    %1099 = vmatprep.subr.bf16.mxu0 0
    %1100 = vmatpush1.bf16.msra.mxu0 %v1094
    %1101 = vmatprep.subr.bf16.mxu0 0
    %1102 = vmatpush1.bf16.msra.mxu0 0
    %1103 = vmatprep.subr.bf16.mxu0 0
    %1104 = vmatpush1.bf16.msra.mxu0 0
    %1105 = vmatprep.subr.bf16.mxu0 0
    %1106 = vmatpush1.bf16.msra.mxu0 0
    %1107 = vmatprep.subr.bf16.mxu0 0
    %1108 = vmatpush1.bf16.msra.mxu0 0
    %1109 = vmatprep.subr.bf16.mxu0 0
    %1110 = vmatpush1.bf16.msra.mxu0 0
    %1111 = vmatprep.subr.bf16.mxu0 0
    %1112 = vmatpush1.bf16.msra.mxu0 0
    %1113 = vmatprep.subr.bf16.mxu0 0
    %1114 = vmatpush1.bf16.msra.mxu0 0
    %1115 = vmatprep.subr.bf16.mxu0 0
    %1116 = vmatpush1.bf16.msra.mxu0 0
    %1117 = vmatprep.subr.bf16.mxu0 0
    %1118 = vmatpush1.bf16.msra.mxu0 0
    %1119 = vmatprep.subr.bf16.mxu0 0
    %1120 = vmatpush1.bf16.msra.mxu0 0
    %1121 = vmatprep.subr.bf16.mxu0 0
    %1122 = vmatpush1.bf16.msra.mxu0 0
    %1123 = vmatprep.subr.bf16.mxu0 0
    %1124 = vmatpush1.bf16.msra.mxu0 0
    %1125 = vmatprep.subr.bf16.mxu0 0
    %1126 = vmatpush1.bf16.msra.mxu0 0
    %1127 = vmatprep.subr.bf16.mxu0 0
    %1128 = vmatpush1.bf16.msra.mxu0 0
    %1129 = vmatprep.mubr.bf16.mxu0 0
    %1130 = vmatmul.mubr.bf16.gmra.mrb[0].mxu0 %v979
    %v1131 = vpop.f32.mrb[0].mxu0
    %v1132 = vadd.f32 0.0, %v1131
    %v1133 = vpop.f32.mrb[0].mxu0
    %v1134 = vpop.f32.mrb[0].mxu0
    %v1135 = vadd.f32 0.0, %v1134
    %v1136 = vpop.f32.mrb[0].mxu0
    %1137 = vdwg.mxu0
    %v1138 = vpack.c.bf16 %v1019, %v1016
    %v1139 = vpack.c.bf16 %v1077, %v1074
    %v1141 = vsel %vm250, %v1138, 0
    %v1144 = vsel %vm250, %v1139, 0
    %1146 = vmatprep.subr.bf16.mxu0 0
    %1147 = vmatpush1.bf16.xpose.msra.mxu0 %v1144
    %1148 = vmatprep.subr.bf16.mxu0 0
    %1149 = vmatpush1.bf16.xpose.msra.mxu0 0
    %1150 = vmatprep.subr.bf16.mxu0 0
    %1151 = vmatpush1.bf16.xpose.msra.mxu0 0
    %1152 = vmatprep.subr.bf16.mxu0 0
    %1153 = vmatpush1.bf16.xpose.msra.mxu0 0
    %1154 = vmatprep.subr.bf16.mxu0 0
    %1155 = vmatpush1.bf16.xpose.msra.mxu0 0
    %1156 = vmatprep.subr.bf16.mxu0 0
    %1157 = vmatpush1.bf16.xpose.msra.mxu0 0
    %1158 = vmatprep.subr.bf16.mxu0 0
    %1159 = vmatpush1.bf16.xpose.msra.mxu0 0
    %1160 = vmatprep.subr.bf16.mxu0 0
    %1161 = vmatpush1.bf16.xpose.msra.mxu0 0
    %1162 = vmatprep.subr.bf16.mxu0 0
    %1163 = vmatpush1.bf16.xpose.msra.mxu0 0
    %1164 = vmatprep.subr.bf16.mxu0 0
    %1165 = vmatpush1.bf16.xpose.msra.mxu0 0
    %1166 = vmatprep.subr.bf16.mxu0 0
    %1167 = vmatpush1.bf16.xpose.msra.mxu0 0
    %1168 = vmatprep.subr.bf16.mxu0 0
    %1169 = vmatpush1.bf16.xpose.msra.mxu0 0
    %1170 = vmatprep.subr.bf16.mxu0 0
    %1171 = vmatpush1.bf16.xpose.msra.mxu0 0
    %1172 = vmatprep.subr.bf16.mxu0 0
    %1173 = vmatpush1.bf16.xpose.msra.mxu0 0
    %1174 = vmatprep.subr.bf16.mxu0 0
    %1175 = vmatpush1.bf16.xpose.msra.mxu0 0
    %1176 = vmatprep.subr.bf16.mxu0 0
    %1177 = vmatpush1.bf16.xpose.msra.mxu0 0
    %1178 = vmatprep.mubr.bf16.mxu0 0
    %1179 = vmatmul.mubr.bf16.gmra.mrb[0].mxu0 %v1141
    %v1180 = vpop.f32.mrb[0].mxu0
    %v1181 = vadd.f32 %v42, %v1180
    %v1182 = vpop.f32.mrb[0].mxu0
    %v1183 = vpop.f32.mrb[0].mxu0
    %v1184 = vadd.f32 %v43, %v1183
    %v1185 = vpop.f32.mrb[0].mxu0
    %1186 = vdwg.mxu0
    %v1187 = vsel %vm250, %v1181, -inf
    %1188 = vmax.xlane.f32.xlu0 %v1187
    %v1189 = vpop.xlane.xlu0 %1188
    %v1190 = vsel %vm250, %v1184, -inf
    %1191 = vmax.xlane.f32.xlu0 %v1190
    %v1192 = vpop.xlane.xlu0 %1191
    %v1193 = vsub.f32 %v1181, %v1189
    %v1194 = vsub.f32 %v1184, %v1192
    %v1195 = vmul.f32 %v1193, 1.442695
    %v1196 = vpow.pop %v1195
    %v1197 = vmul.f32 %v1194, 1.442695
    %v1198 = vpow.pop %v1197
    %v1199 = vsel %vm250, %v1196, 0.0
    %1200 = vadd.xlane.f32.xlu0 %v1199
    %v1201 = vpop.xlane.xlu0 %1200
    %v1202 = vsel %vm250, %v1198, 0.0
    %1203 = vadd.xlane.f32.xlu0 %v1202
    %v1204 = vpop.xlane.xlu0 %1203
    %v1205 = vrcp.pop %v1201
    %v1206 = vmul.f32 %v1196, %v1205
    %v1207 = vrcp.pop %v1204
    %v1208 = vmul.f32 %v1198, %v1207
    %v1209 = vpack.c.bf16 %v1208, %v1206
    %v1210 = vpack.c.bf16 %v1135, %v1132
    %v1212 = vsel %vm250, %v1209, 0
    %1214 = vmatprep.subr.bf16.mxu0 0
    %1215 = vmatpush1.bf16.msra.mxu0 %v1210
    %1216 = vmatprep.subr.bf16.mxu0 0
    %1217 = vmatpush1.bf16.msra.mxu0 0
    %1218 = vmatprep.subr.bf16.mxu0 0
    %1219 = vmatpush1.bf16.msra.mxu0 0
    %1220 = vmatprep.subr.bf16.mxu0 0
    %1221 = vmatpush1.bf16.msra.mxu0 0
    %1222 = vmatprep.subr.bf16.mxu0 0
    %1223 = vmatpush1.bf16.msra.mxu0 0
    %1224 = vmatprep.subr.bf16.mxu0 0
    %1225 = vmatpush1.bf16.msra.mxu0 0
    %1226 = vmatprep.subr.bf16.mxu0 0
    %1227 = vmatpush1.bf16.msra.mxu0 0
    %1228 = vmatprep.subr.bf16.mxu0 0
    %1229 = vmatpush1.bf16.msra.mxu0 0
    %1230 = vmatprep.subr.bf16.mxu0 0
    %1231 = vmatpush1.bf16.msra.mxu0 0
    %1232 = vmatprep.subr.bf16.mxu0 0
    %1233 = vmatpush1.bf16.msra.mxu0 0
    %1234 = vmatprep.subr.bf16.mxu0 0
    %1235 = vmatpush1.bf16.msra.mxu0 0
    %1236 = vmatprep.subr.bf16.mxu0 0
    %1237 = vmatpush1.bf16.msra.mxu0 0
    %1238 = vmatprep.subr.bf16.mxu0 0
    %1239 = vmatpush1.bf16.msra.mxu0 0
    %1240 = vmatprep.subr.bf16.mxu0 0
    %1241 = vmatpush1.bf16.msra.mxu0 0
    %1242 = vmatprep.subr.bf16.mxu0 0
    %1243 = vmatpush1.bf16.msra.mxu0 0
    %1244 = vmatprep.subr.bf16.mxu0 0
    %1245 = vmatpush1.bf16.msra.mxu0 0
    %1246 = vmatprep.mubr.bf16.mxu0 0
    %1247 = vmatmul.mubr.bf16.gmra.mrb[0].mxu0 %v1212
    %v1248 = vpop.f32.mrb[0].mxu0
    %v1249 = vadd.f32 0.0, %v1248
    %v1250 = vpop.f32.mrb[0].mxu0
    %v1251 = vpop.f32.mrb[0].mxu0
    %v1252 = vadd.f32 0.0, %v1251
    %v1253 = vpop.f32.mrb[0].mxu0
    %1254 = vdwg.mxu0
    %v1255 = vpack.c.bf16 %v1252, %v1249
    %s1256 = scalar_lea.vmem %s6, 16
    %v1257 = vld [vmem:[%s1256] sm:$0xf]
    %v1258 = vld [vmem:[%s1256 + $0x4] sm:$0xf]
    %s1259 = scalar_lea.vmem %s3, 48
    %v1260 = vld [vmem:[%s1259] sm:$0xf]
    %v1261 = vld [vmem:[%s1259 + $0x4] sm:$0xf]
    %v1262 = vld [vmem:[%s1259 + $0x8] sm:$0xf]
    %v1263 = vld [vmem:[%s1259 + $0xc] sm:$0xf]
    %v1268 = vunpack.c.l.b16 %v1260
    %v1269 = vunpack.c.l.b16 %v1261
    %v1270 = vunpack.c.l.b16 %v1262
    %v1271 = vunpack.c.l.b16 %v1263
    %v1272 = vpack.c.b16 %v1269, %v1268
    %v1273 = vpack.c.b16 %v1271, %v1270
    %1276 = vmatprep.subr.bf16.mxu0 0
    %1277 = vmatpush1.bf16.msra.mxu0 %v1272
    %1278 = vmatprep.subr.bf16.mxu0 0
    %1279 = vmatpush1.bf16.msra.mxu0 %v1273
    %1280 = vmatprep.subr.bf16.mxu0 0
    %1281 = vmatpush1.bf16.msra.mxu0 0
    %1282 = vmatprep.subr.bf16.mxu0 0
    %1283 = vmatpush1.bf16.msra.mxu0 0
    %1284 = vmatprep.subr.bf16.mxu0 0
    %1285 = vmatpush1.bf16.msra.mxu0 0
    %1286 = vmatprep.subr.bf16.mxu0 0
    %1287 = vmatpush1.bf16.msra.mxu0 0
    %1288 = vmatprep.subr.bf16.mxu0 0
    %1289 = vmatpush1.bf16.msra.mxu0 0
    %1290 = vmatprep.subr.bf16.mxu0 0
    %1291 = vmatpush1.bf16.msra.mxu0 0
    %1292 = vmatprep.subr.bf16.mxu0 0
    %1293 = vmatpush1.bf16.msra.mxu0 0
    %1294 = vmatprep.subr.bf16.mxu0 0
    %1295 = vmatpush1.bf16.msra.mxu0 0
    %1296 = vmatprep.subr.bf16.mxu0 0
    %1297 = vmatpush1.bf16.msra.mxu0 0
    %1298 = vmatprep.subr.bf16.mxu0 0
    %1299 = vmatpush1.bf16.msra.mxu0 0
    %1300 = vmatprep.subr.bf16.mxu0 0
    %1301 = vmatpush1.bf16.msra.mxu0 0
    %1302 = vmatprep.subr.bf16.mxu0 0
    %1303 = vmatpush1.bf16.msra.mxu0 0
    %1304 = vmatprep.subr.bf16.mxu0 0
    %1305 = vmatpush1.bf16.msra.mxu0 0
    %1306 = vmatprep.subr.bf16.mxu0 0
    %1307 = vmatpush1.bf16.msra.mxu0 0
    %1308 = vmatprep.mubr.bf16.mxu0 0
    %1309 = vmatmul.mubr.bf16.gmra.mrb[0].mxu0 %v979
    %v1310 = vpop.f32.mrb[0].mxu0
    %v1311 = vadd.f32 0.0, %v1310
    %v1312 = vpop.f32.mrb[0].mxu0
    %v1313 = vpop.f32.mrb[0].mxu0
    %v1314 = vadd.f32 0.0, %v1313
    %v1315 = vpop.f32.mrb[0].mxu0
    %1316 = vdwg.mxu0
    %s1317 = scalar_lea.vmem %s4, 48
    %v1318 = vld [vmem:[%s1317] sm:$0xf]
    %v1319 = vld [vmem:[%s1317 + $0x4] sm:$0xf]
    %v1320 = vld [vmem:[%s1317 + $0x8] sm:$0xf]
    %v1321 = vld [vmem:[%s1317 + $0xc] sm:$0xf]
    %v1326 = vunpack.c.l.b16 %v1318
    %v1327 = vunpack.c.l.b16 %v1319
    %v1328 = vunpack.c.l.b16 %v1320
    %v1329 = vunpack.c.l.b16 %v1321
    %v1330 = vpack.c.b16 %v1327, %v1326
    %v1331 = vpack.c.b16 %v1329, %v1328
    %1334 = vmatprep.subr.bf16.mxu0 0
    %1335 = vmatpush1.bf16.msra.mxu0 %v1330
    %1336 = vmatprep.subr.bf16.mxu0 0
    %1337 = vmatpush1.bf16.msra.mxu0 %v1331
    %1338 = vmatprep.subr.bf16.mxu0 0
    %1339 = vmatpush1.bf16.msra.mxu0 0
    %1340 = vmatprep.subr.bf16.mxu0 0
    %1341 = vmatpush1.bf16.msra.mxu0 0
    %1342 = vmatprep.subr.bf16.mxu0 0
    %1343 = vmatpush1.bf16.msra.mxu0 0
    %1344 = vmatprep.subr.bf16.mxu0 0
    %1345 = vmatpush1.bf16.msra.mxu0 0
    %1346 = vmatprep.subr.bf16.mxu0 0
    %1347 = vmatpush1.bf16.msra.mxu0 0
    %1348 = vmatprep.subr.bf16.mxu0 0
    %1349 = vmatpush1.bf16.msra.mxu0 0
    %1350 = vmatprep.subr.bf16.mxu0 0
    %1351 = vmatpush1.bf16.msra.mxu0 0
    %1352 = vmatprep.subr.bf16.mxu0 0
    %1353 = vmatpush1.bf16.msra.mxu0 0
    %1354 = vmatprep.subr.bf16.mxu0 0
    %1355 = vmatpush1.bf16.msra.mxu0 0
    %1356 = vmatprep.subr.bf16.mxu0 0
    %1357 = vmatpush1.bf16.msra.mxu0 0
    %1358 = vmatprep.subr.bf16.mxu0 0
    %1359 = vmatpush1.bf16.msra.mxu0 0
    %1360 = vmatprep.subr.bf16.mxu0 0
    %1361 = vmatpush1.bf16.msra.mxu0 0
    %1362 = vmatprep.subr.bf16.mxu0 0
    %1363 = vmatpush1.bf16.msra.mxu0 0
    %1364 = vmatprep.subr.bf16.mxu0 0
    %1365 = vmatpush1.bf16.msra.mxu0 0
    %1366 = vmatprep.mubr.bf16.mxu0 0
    %1367 = vmatmul.mubr.bf16.gmra.mrb[0].mxu0 %v979
    %v1368 = vpop.f32.mrb[0].mxu0
    %v1369 = vadd.f32 0.0, %v1368
    %v1370 = vpop.f32.mrb[0].mxu0
    %v1371 = vpop.f32.mrb[0].mxu0
    %v1372 = vadd.f32 0.0, %v1371
    %v1373 = vpop.f32.mrb[0].mxu0
    %1374 = vdwg.mxu0
    %s1375 = scalar_lea.vmem %s5, 48
    %v1376 = vld [vmem:[%s1375] sm:$0xf]
    %v1377 = vld [vmem:[%s1375 + $0x4] sm:$0xf]
    %v1378 = vld [vmem:[%s1375 + $0x8] sm:$0xf]
    %v1379 = vld [vmem:[%s1375 + $0xc] sm:$0xf]
    %v1384 = vunpack.c.l.b16 %v1376
    %v1385 = vunpack.c.l.b16 %v1377
    %v1386 = vunpack.c.l.b16 %v1378
    %v1387 = vunpack.c.l.b16 %v1379
    %v1388 = vpack.c.b16 %v1385, %v1384
    %v1389 = vpack.c.b16 %v1387, %v1386
    %1392 = vmatprep.subr.bf16.mxu0 0
    %1393 = vmatpush1.bf16.msra.mxu0 %v1388
    %1394 = vmatprep.subr.bf16.mxu0 0
    %1395 = vmatpush1.bf16.msra.mxu0 %v1389
    %1396 = vmatprep.subr.bf16.mxu0 0
    %1397 = vmatpush1.bf16.msra.mxu0 0
    %1398 = vmatprep.subr.bf16.mxu0 0
    %1399 = vmatpush1.bf16.msra.mxu0 0
    %1400 = vmatprep.subr.bf16.mxu0 0
    %1401 = vmatpush1.bf16.msra.mxu0 0
    %1402 = vmatprep.subr.bf16.mxu0 0
    %1403 = vmatpush1.bf16.msra.mxu0 0
    %1404 = vmatprep.subr.bf16.mxu0 0
    %1405 = vmatpush1.bf16.msra.mxu0 0
    %1406 = vmatprep.subr.bf16.mxu0 0
    %1407 = vmatpush1.bf16.msra.mxu0 0
    %1408 = vmatprep.subr.bf16.mxu0 0
    %1409 = vmatpush1.bf16.msra.mxu0 0
    %1410 = vmatprep.subr.bf16.mxu0 0
    %1411 = vmatpush1.bf16.msra.mxu0 0
    %1412 = vmatprep.subr.bf16.mxu0 0
    %1413 = vmatpush1.bf16.msra.mxu0 0
    %1414 = vmatprep.subr.bf16.mxu0 0
    %1415 = vmatpush1.bf16.msra.mxu0 0
    %1416 = vmatprep.subr.bf16.mxu0 0
    %1417 = vmatpush1.bf16.msra.mxu0 0
    %1418 = vmatprep.subr.bf16.mxu0 0
    %1419 = vmatpush1.bf16.msra.mxu0 0
    %1420 = vmatprep.subr.bf16.mxu0 0
    %1421 = vmatpush1.bf16.msra.mxu0 0
    %1422 = vmatprep.subr.bf16.mxu0 0
    %1423 = vmatpush1.bf16.msra.mxu0 0
    %1424 = vmatprep.mubr.bf16.mxu0 0
    %1425 = vmatmul.mubr.bf16.gmra.mrb[0].mxu0 %v979
    %v1426 = vpop.f32.mrb[0].mxu0
    %v1427 = vadd.f32 0.0, %v1426
    %v1428 = vpop.f32.mrb[0].mxu0
    %v1429 = vpop.f32.mrb[0].mxu0
    %v1430 = vadd.f32 0.0, %v1429
    %v1431 = vpop.f32.mrb[0].mxu0
    %1432 = vdwg.mxu0
    %v1433 = vpack.c.bf16 %v1314, %v1311
    %v1434 = vpack.c.bf16 %v1372, %v1369
    %v1436 = vsel %vm250, %v1433, 0
    %v1439 = vsel %vm250, %v1434, 0
    %1441 = vmatprep.subr.bf16.mxu0 0
    %1442 = vmatpush1.bf16.xpose.msra.mxu0 %v1439
    %1443 = vmatprep.subr.bf16.mxu0 0
    %1444 = vmatpush1.bf16.xpose.msra.mxu0 0
    %1445 = vmatprep.subr.bf16.mxu0 0
    %1446 = vmatpush1.bf16.xpose.msra.mxu0 0
    %1447 = vmatprep.subr.bf16.mxu0 0
    %1448 = vmatpush1.bf16.xpose.msra.mxu0 0
    %1449 = vmatprep.subr.bf16.mxu0 0
    %1450 = vmatpush1.bf16.xpose.msra.mxu0 0
    %1451 = vmatprep.subr.bf16.mxu0 0
    %1452 = vmatpush1.bf16.xpose.msra.mxu0 0
    %1453 = vmatprep.subr.bf16.mxu0 0
    %1454 = vmatpush1.bf16.xpose.msra.mxu0 0
    %1455 = vmatprep.subr.bf16.mxu0 0
    %1456 = vmatpush1.bf16.xpose.msra.mxu0 0
    %1457 = vmatprep.subr.bf16.mxu0 0
    %1458 = vmatpush1.bf16.xpose.msra.mxu0 0
    %1459 = vmatprep.subr.bf16.mxu0 0
    %1460 = vmatpush1.bf16.xpose.msra.mxu0 0
    %1461 = vmatprep.subr.bf16.mxu0 0
    %1462 = vmatpush1.bf16.xpose.msra.mxu0 0
    %1463 = vmatprep.subr.bf16.mxu0 0
    %1464 = vmatpush1.bf16.xpose.msra.mxu0 0
    %1465 = vmatprep.subr.bf16.mxu0 0
    %1466 = vmatpush1.bf16.xpose.msra.mxu0 0
    %1467 = vmatprep.subr.bf16.mxu0 0
    %1468 = vmatpush1.bf16.xpose.msra.mxu0 0
    %1469 = vmatprep.subr.bf16.mxu0 0
    %1470 = vmatpush1.bf16.xpose.msra.mxu0 0
    %1471 = vmatprep.subr.bf16.mxu0 0
    %1472 = vmatpush1.bf16.xpose.msra.mxu0 0
    %1473 = vmatprep.mubr.bf16.mxu0 0
    %1474 = vmatmul.mubr.bf16.gmra.mrb[0].mxu0 %v1436
    %v1475 = vpop.f32.mrb[0].mxu0
    %v1476 = vadd.f32 %v44, %v1475
    %v1477 = vpop.f32.mrb[0].mxu0
    %v1478 = vpop.f32.mrb[0].mxu0
    %v1479 = vadd.f32 %v45, %v1478
    %v1480 = vpop.f32.mrb[0].mxu0
    %1481 = vdwg.mxu0
    %v1482 = vsel %vm250, %v1476, -inf
    %1483 = vmax.xlane.f32.xlu0 %v1482
    %v1484 = vpop.xlane.xlu0 %1483
    %v1485 = vsel %vm250, %v1479, -inf
    %1486 = vmax.xlane.f32.xlu0 %v1485
    %v1487 = vpop.xlane.xlu0 %1486
    %v1488 = vsub.f32 %v1476, %v1484
    %v1489 = vsub.f32 %v1479, %v1487
    %v1490 = vmul.f32 %v1488, 1.442695
    %v1491 = vpow.pop %v1490
    %v1492 = vmul.f32 %v1489, 1.442695
    %v1493 = vpow.pop %v1492
    %v1494 = vsel %vm250, %v1491, 0.0
    %1495 = vadd.xlane.f32.xlu0 %v1494
    %v1496 = vpop.xlane.xlu0 %1495
    %v1497 = vsel %vm250, %v1493, 0.0
    %1498 = vadd.xlane.f32.xlu0 %v1497
    %v1499 = vpop.xlane.xlu0 %1498
    %v1500 = vrcp.pop %v1496
    %v1501 = vmul.f32 %v1491, %v1500
    %v1502 = vrcp.pop %v1499
    %v1503 = vmul.f32 %v1493, %v1502
    %v1504 = vpack.c.bf16 %v1503, %v1501
    %v1505 = vpack.c.bf16 %v1430, %v1427
    %v1507 = vsel %vm250, %v1504, 0
    %1509 = vmatprep.subr.bf16.mxu0 0
    %1510 = vmatpush1.bf16.msra.mxu0 %v1505
    %1511 = vmatprep.subr.bf16.mxu0 0
    %1512 = vmatpush1.bf16.msra.mxu0 0
    %1513 = vmatprep.subr.bf16.mxu0 0
    %1514 = vmatpush1.bf16.msra.mxu0 0
    %1515 = vmatprep.subr.bf16.mxu0 0
    %1516 = vmatpush1.bf16.msra.mxu0 0
    %1517 = vmatprep.subr.bf16.mxu0 0
    %1518 = vmatpush1.bf16.msra.mxu0 0
    %1519 = vmatprep.subr.bf16.mxu0 0
    %1520 = vmatpush1.bf16.msra.mxu0 0
    %1521 = vmatprep.subr.bf16.mxu0 0
    %1522 = vmatpush1.bf16.msra.mxu0 0
    %1523 = vmatprep.subr.bf16.mxu0 0
    %1524 = vmatpush1.bf16.msra.mxu0 0
    %1525 = vmatprep.subr.bf16.mxu0 0
    %1526 = vmatpush1.bf16.msra.mxu0 0
    %1527 = vmatprep.subr.bf16.mxu0 0
    %1528 = vmatpush1.bf16.msra.mxu0 0
    %1529 = vmatprep.subr.bf16.mxu0 0
    %1530 = vmatpush1.bf16.msra.mxu0 0
    %1531 = vmatprep.subr.bf16.mxu0 0
    %1532 = vmatpush1.bf16.msra.mxu0 0
    %1533 = vmatprep.subr.bf16.mxu0 0
    %1534 = vmatpush1.bf16.msra.mxu0 0
    %1535 = vmatprep.subr.bf16.mxu0 0
    %1536 = vmatpush1.bf16.msra.mxu0 0
    %1537 = vmatprep.subr.bf16.mxu0 0
    %1538 = vmatpush1.bf16.msra.mxu0 0
    %1539 = vmatprep.subr.bf16.mxu0 0
    %1540 = vmatpush1.bf16.msra.mxu0 0
    %1541 = vmatprep.mubr.bf16.mxu0 0
    %1542 = vmatmul.mubr.bf16.gmra.mrb[0].mxu0 %v1507
    %v1543 = vpop.f32.mrb[0].mxu0
    %v1544 = vadd.f32 0.0, %v1543
    %v1545 = vpop.f32.mrb[0].mxu0
    %v1546 = vpop.f32.mrb[0].mxu0
    %v1547 = vadd.f32 0.0, %v1546
    %v1548 = vpop.f32.mrb[0].mxu0
    %1549 = vdwg.mxu0
    %v1550 = vpack.c.bf16 %v1547, %v1544
    %s1551 = scalar_lea.vmem %s6, 24
    %v1552 = vld [vmem:[%s1551] sm:$0xf]
    %v1553 = vld [vmem:[%s1551 + $0x4] sm:$0xf]
    %v1556 = vunpack.c.l.b16 %v1552
    %v1557 = vunpack.c.l.b16 %v1553
    %v1558 = vpack.c.b16 %v1557, %v1556
    %v1561 = vsel %vm250, %v1550, 0
    %1563 = vmatprep.subr.bf16.mxu0 0
    %1564 = vmatpush1.bf16.msra.mxu0 %v1558
    %1565 = vmatprep.subr.bf16.mxu0 0
    %1566 = vmatpush1.bf16.msra.mxu0 0
    %1567 = vmatprep.subr.bf16.mxu0 0
    %1568 = vmatpush1.bf16.msra.mxu0 0
    %1569 = vmatprep.subr.bf16.mxu0 0
    %1570 = vmatpush1.bf16.msra.mxu0 0
    %1571 = vmatprep.subr.bf16.mxu0 0
    %1572 = vmatpush1.bf16.msra.mxu0 0
    %1573 = vmatprep.subr.bf16.mxu0 0
    %1574 = vmatpush1.bf16.msra.mxu0 0
    %1575 = vmatprep.subr.bf16.mxu0 0
    %1576 = vmatpush1.bf16.msra.mxu0 0
    %1577 = vmatprep.subr.bf16.mxu0 0
    %1578 = vmatpush1.bf16.msra.mxu0 0
    %1579 = vmatprep.subr.bf16.mxu0 0
    %1580 = vmatpush1.bf16.msra.mxu0 0
    %1581 = vmatprep.subr.bf16.mxu0 0
    %1582 = vmatpush1.bf16.msra.mxu0 0
    %1583 = vmatprep.subr.bf16.mxu0 0
    %1584 = vmatpush1.bf16.msra.mxu0 0
    %1585 = vmatprep.subr.bf16.mxu0 0
    %1586 = vmatpush1.bf16.msra.mxu0 0
    %1587 = vmatprep.subr.bf16.mxu0 0
    %1588 = vmatpush1.bf16.msra.mxu0 0
    %1589 = vmatprep.subr.bf16.mxu0 0
    %1590 = vmatpush1.bf16.msra.mxu0 0
    %1591 = vmatprep.subr.bf16.mxu0 0
    %1592 = vmatpush1.bf16.msra.mxu0 0
    %1593 = vmatprep.subr.bf16.mxu0 0
    %1594 = vmatpush1.bf16.msra.mxu0 0
    %1595 = vmatprep.mubr.bf16.mxu0 0
    %1596 = vmatmul.mubr.bf16.gmra.mrb[0].mxu0 %v1561
    %v1597 = vpop.f32.mrb[0].mxu0
    %v1598 = vadd.f32 0.0, %v1597
    %v1599 = vpop.f32.mrb[0].mxu0
    %v1600 = vpop.f32.mrb[0].mxu0
    %v1601 = vadd.f32 0.0, %v1600
    %v1602 = vpop.f32.mrb[0].mxu0
    %1603 = vdwg.mxu0
    %v1606 = vunpack.c.l.b16 %v1257
    %v1607 = vunpack.c.l.b16 %v1258
    %v1608 = vpack.c.b16 %v1607, %v1606
    %v1611 = vsel %vm250, %v1255, 0
    %1613 = vmatprep.subr.bf16.mxu0 0
    %1614 = vmatpush1.bf16.msra.mxu0 %v1608
    %1615 = vmatprep.subr.bf16.mxu0 0
    %1616 = vmatpush1.bf16.msra.mxu0 0
    %1617 = vmatprep.subr.bf16.mxu0 0
    %1618 = vmatpush1.bf16.msra.mxu0 0
    %1619 = vmatprep.subr.bf16.mxu0 0
    %1620 = vmatpush1.bf16.msra.mxu0 0
    %1621 = vmatprep.subr.bf16.mxu0 0
    %1622 = vmatpush1.bf16.msra.mxu0 0
    %1623 = vmatprep.subr.bf16.mxu0 0
    %1624 = vmatpush1.bf16.msra.mxu0 0
    %1625 = vmatprep.subr.bf16.mxu0 0
    %1626 = vmatpush1.bf16.msra.mxu0 0
    %1627 = vmatprep.subr.bf16.mxu0 0
    %1628 = vmatpush1.bf16.msra.mxu0 0
    %1629 = vmatprep.subr.bf16.mxu0 0
    %1630 = vmatpush1.bf16.msra.mxu0 0
    %1631 = vmatprep.subr.bf16.mxu0 0
    %1632 = vmatpush1.bf16.msra.mxu0 0
    %1633 = vmatprep.subr.bf16.mxu0 0
    %1634 = vmatpush1.bf16.msra.mxu0 0
    %1635 = vmatprep.subr.bf16.mxu0 0
    %1636 = vmatpush1.bf16.msra.mxu0 0
    %1637 = vmatprep.subr.bf16.mxu0 0
    %1638 = vmatpush1.bf16.msra.mxu0 0
    %1639 = vmatprep.subr.bf16.mxu0 0
    %1640 = vmatpush1.bf16.msra.mxu0 0
    %1641 = vmatprep.subr.bf16.mxu0 0
    %1642 = vmatpush1.bf16.msra.mxu0 0
    %1643 = vmatprep.subr.bf16.mxu0 0
    %1644 = vmatpush1.bf16.msra.mxu0 0
    %1645 = vmatprep.mubr.bf16.mxu0 0
    %1646 = vmatmul.mubr.bf16.gmra.mrb[0].mxu0 %v1611
    %v1647 = vpop.f32.mrb[0].mxu0
    %v1648 = vadd.f32 %v1598, %v1647
    %v1649 = vpop.f32.mrb[0].mxu0
    %v1650 = vpop.f32.mrb[0].mxu0
    %v1651 = vadd.f32 %v1601, %v1650
    %v1652 = vpop.f32.mrb[0].mxu0
    %1653 = vdwg.mxu0
    %v1654 = vadd.f32 %v932, %v1648
    %v1655 = vadd.f32 %v933, %v1651
    %s1656 = scalar_lea.vmem %s7, 1
    %v1657 = vld [vmem:[%s1656] sm:$0x1]
    %v1658 = vmul.f32 %v1654, %v1654
    %v1659 = vmul.f32 %v1655, %v1655
    %v1660 = vsel %vm49, %v1658, 0.0
    %1661 = vadd.xlane.f32.xlu0 %v1660
    %v1662 = vpop.xlane.xlu0 %1661
    %v1663 = vsel %vm49, %v1659, 0.0
    %1664 = vadd.xlane.f32.xlu0 %v1663
    %v1665 = vpop.xlane.xlu0 %1664
    %v1666 = vmul.f32 %v1662, %v56
    %v1667 = vmul.f32 %v1665, %v56
    %v1668 = vadd.f32 %v1666, 1e-06
    %v1669 = vadd.f32 %v1667, 1e-06
    %v1670 = vrsqrt.pop %v1668
    %v1671 = vrsqrt.pop %v1669
    %v1672 = vmul.f32 %v1654, %v1670
    %v1673 = vmul.f32 %v1655, %v1671
    %v1675 = vlaneseq
    %v1676 = vshrl.u32 %v1675, 7
    %v1677 = vsub.s32 0, %v1676
    %v1678 = vrot.slane %v1657, %v1677
    %v1680 = vmul.f32 %v1672, %v1678
    %v1681 = vmul.f32 %v1673, %v1678
    %v1682 = vpack.c.bf16 %v1681, %v1680
    %s1683 = scalar_lea.vmem %s8, 16
    %v1684 = vld [vmem:[%s1683] sm:$0xf]
    %v1685 = vld [vmem:[%s1683 + $0x4] sm:$0xf]
    %v1686 = vld [vmem:[%s1683 + $0x8] sm:$0xf]
    %v1687 = vld [vmem:[%s1683 + $0xc] sm:$0xf]
    %v1692 = vunpack.c.l.b16 %v1684
    %v1693 = vunpack.c.l.b16 %v1685
    %v1694 = vunpack.c.l.b16 %v1686
    %v1695 = vunpack.c.l.b16 %v1687
    %v1696 = vpack.c.b16 %v1693, %v1692
    %v1697 = vpack.c.b16 %v1695, %v1694
    %v1701 = vsel %vm49, %v1682, 0
    %1703 = vmatprep.subr.bf16.mxu0 0
    %1704 = vmatpush1.bf16.msra.mxu0 %v1696
    %1705 = vmatprep.subr.bf16.mxu0 0
    %1706 = vmatpush1.bf16.msra.mxu0 %v1697
    %1707 = vmatprep.subr.bf16.mxu0 0
    %1708 = vmatpush1.bf16.msra.mxu0 0
    %1709 = vmatprep.subr.bf16.mxu0 0
    %1710 = vmatpush1.bf16.msra.mxu0 0
    %1711 = vmatprep.subr.bf16.mxu0 0
    %1712 = vmatpush1.bf16.msra.mxu0 0
    %1713 = vmatprep.subr.bf16.mxu0 0
    %1714 = vmatpush1.bf16.msra.mxu0 0
    %1715 = vmatprep.subr.bf16.mxu0 0
    %1716 = vmatpush1.bf16.msra.mxu0 0
    %1717 = vmatprep.subr.bf16.mxu0 0
    %1718 = vmatpush1.bf16.msra.mxu0 0
    %1719 = vmatprep.subr.bf16.mxu0 0
    %1720 = vmatpush1.bf16.msra.mxu0 0
    %1721 = vmatprep.subr.bf16.mxu0 0
    %1722 = vmatpush1.bf16.msra.mxu0 0
    %1723 = vmatprep.subr.bf16.mxu0 0
    %1724 = vmatpush1.bf16.msra.mxu0 0
    %1725 = vmatprep.subr.bf16.mxu0 0
    %1726 = vmatpush1.bf16.msra.mxu0 0
    %1727 = vmatprep.subr.bf16.mxu0 0
    %1728 = vmatpush1.bf16.msra.mxu0 0
    %1729 = vmatprep.subr.bf16.mxu0 0
    %1730 = vmatpush1.bf16.msra.mxu0 0
    %1731 = vmatprep.subr.bf16.mxu0 0
    %1732 = vmatpush1.bf16.msra.mxu0 0
    %1733 = vmatprep.subr.bf16.mxu0 0
    %1734 = vmatpush1.bf16.msra.mxu0 0
    %1735 = vmatprep.mubr.bf16.mxu0 0
    %1736 = vmatmul.mubr.bf16.gmra.mrb[0].mxu0 %v1701
    %v1737 = vpop.f32.mrb[0].mxu0
    %v1738 = vadd.f32 0.0, %v1737
    %v1739 = vpop.f32.mrb[0].mxu0
    %v1740 = vpop.f32.mrb[0].mxu0
    %v1741 = vadd.f32 0.0, %v1740
    %v1742 = vpop.f32.mrb[0].mxu0
    %1743 = vdwg.mxu0
    %v1744 = vmax.f32 %v1738, 0.0
    %v1745 = vmax.f32 %v1741, 0.0
    %v1746 = vpack.c.bf16 %v1745, %v1744
    %s1747 = scalar_lea.vmem %s9, 32
    %v1748 = vld [vmem:[%s1747] sm:$0xf]
    %v1749 = vld [vmem:[%s1747 + $0x4] sm:$0xf]
    %v1750 = vld [vmem:[%s1747 + $0x8] sm:$0xf]
    %v1751 = vld [vmem:[%s1747 + $0xc] sm:$0xf]
    %v1752 = vld [vmem:[%s1747 + $0x10] sm:$0xf]
    %v1753 = vld [vmem:[%s1747 + $0x14] sm:$0xf]
    %v1754 = vld [vmem:[%s1747 + $0x18] sm:$0xf]
    %v1755 = vld [vmem:[%s1747 + $0x1c] sm:$0xf]
    %v1764 = vunpack.c.l.b16 %v1748
    %v1765 = vunpack.c.l.b16 %v1749
    %v1766 = vunpack.c.l.b16 %v1750
    %v1767 = vunpack.c.l.b16 %v1751
    %v1768 = vunpack.c.l.b16 %v1752
    %v1769 = vunpack.c.l.b16 %v1753
    %v1770 = vunpack.c.l.b16 %v1754
    %v1771 = vunpack.c.l.b16 %v1755
    %v1772 = vpack.c.b16 %v1765, %v1764
    %v1773 = vpack.c.b16 %v1767, %v1766
    %v1774 = vpack.c.b16 %v1769, %v1768
    %v1775 = vpack.c.b16 %v1771, %v1770
    %v1781 = vsel %vm887, %v1746, 0
    %1783 = vmatprep.subr.bf16.mxu0 0
    %1784 = vmatpush1.bf16.msra.mxu0 %v1772
    %1785 = vmatprep.subr.bf16.mxu0 0
    %1786 = vmatpush1.bf16.msra.mxu0 %v1773
    %1787 = vmatprep.subr.bf16.mxu0 0
    %1788 = vmatpush1.bf16.msra.mxu0 %v1774
    %1789 = vmatprep.subr.bf16.mxu0 0
    %1790 = vmatpush1.bf16.msra.mxu0 %v1775
    %1791 = vmatprep.subr.bf16.mxu0 0
    %1792 = vmatpush1.bf16.msra.mxu0 0
    %1793 = vmatprep.subr.bf16.mxu0 0
    %1794 = vmatpush1.bf16.msra.mxu0 0
    %1795 = vmatprep.subr.bf16.mxu0 0
    %1796 = vmatpush1.bf16.msra.mxu0 0
    %1797 = vmatprep.subr.bf16.mxu0 0
    %1798 = vmatpush1.bf16.msra.mxu0 0
    %1799 = vmatprep.subr.bf16.mxu0 0
    %1800 = vmatpush1.bf16.msra.mxu0 0
    %1801 = vmatprep.subr.bf16.mxu0 0
    %1802 = vmatpush1.bf16.msra.mxu0 0
    %1803 = vmatprep.subr.bf16.mxu0 0
    %1804 = vmatpush1.bf16.msra.mxu0 0
    %1805 = vmatprep.subr.bf16.mxu0 0
    %1806 = vmatpush1.bf16.msra.mxu0 0
    %1807 = vmatprep.subr.bf16.mxu0 0
    %1808 = vmatpush1.bf16.msra.mxu0 0
    %1809 = vmatprep.subr.bf16.mxu0 0
    %1810 = vmatpush1.bf16.msra.mxu0 0
    %1811 = vmatprep.subr.bf16.mxu0 0
    %1812 = vmatpush1.bf16.msra.mxu0 0
    %1813 = vmatprep.subr.bf16.mxu0 0
    %1814 = vmatpush1.bf16.msra.mxu0 0
    %1815 = vmatprep.mubr.bf16.mxu0 0
    %1816 = vmatmul.mubr.bf16.gmra.mrb[0].mxu0 %v1781
    %v1817 = vpop.f32.mrb[0].mxu0
    %v1818 = vadd.f32 0.0, %v1817
    %v1819 = vpop.f32.mrb[0].mxu0
    %v1820 = vpop.f32.mrb[0].mxu0
    %v1821 = vadd.f32 0.0, %v1820
    %v1822 = vpop.f32.mrb[0].mxu0
    %1823 = vdwg.mxu0
    %v1824 = vadd.f32 %v1654, %v1818
    %v1825 = vadd.f32 %v1655, %v1821
    %v1826 = vld [vmem:[%s10] sm:$0x1]
    %v1827 = vmul.f32 %v1824, %v1824
    %v1828 = vmul.f32 %v1825, %v1825
    %v1829 = vsel %vm49, %v1827, 0.0
    %1830 = vadd.xlane.f32.xlu0 %v1829
    %v1831 = vpop.xlane.xlu0 %1830
    %v1832 = vsel %vm49, %v1828, 0.0
    %1833 = vadd.xlane.f32.xlu0 %v1832
    %v1834 = vpop.xlane.xlu0 %1833
    %v1835 = vmul.f32 %v1831, %v56
    %v1836 = vmul.f32 %v1834, %v56
    %v1837 = vadd.f32 %v1835, 1e-06
    %v1838 = vadd.f32 %v1836, 1e-06
    %v1839 = vrsqrt.pop %v1837
    %v1840 = vrsqrt.pop %v1838
    %v1841 = vmul.f32 %v1824, %v1839
    %v1842 = vmul.f32 %v1825, %v1840
    %v1844 = vlaneseq
    %v1845 = vshrl.u32 %v1844, 7
    %v1846 = vsub.s32 0, %v1845
    %v1847 = vrot.slane %v1826, %v1846
    %v1849 = vmul.f32 %v1841, %v1847
    %v1850 = vmul.f32 %v1842, %v1847
    %1851 = vst.msk [vmem:[#allocation2] sm:$0xff] %vm49, %v1849
    %1852 = vst.msk [vmem:[#allocation2 + $0x8] sm:$0xff] %vm49, %v1850
    // Predicated region
    $region46: #{encoder_forward.1} parent=1 // pred_check
      _
    $region47: #{encoder_forward.1} parent=1 // pred_check_branch
      %1854 = sbr.rel (0) target = $region49
    $region48: #{encoder_forward.1} parent=1 // pred_region
      %s1856 = ssub.s32 256, 256
      %1857 = vsyncadd [#allocation3], %s1856
      %s1858 = sshll.u32 [#allocation2], 4
      %s1859 = int_to_ptr.vmem [resolvable:$true] %s1858
      %1864 = dma.vmem_to_hbm [thread:$0]  %s1859, 256, %s11, [#allocation3], 128, 128, 8
    $region49: #{encoder_forward.1} parent=1 // pred_fallthru
      _
    // Predicated region
    $region50: #{encoder_forward.1} parent=1 // pred_check
      _
    $region51: #{encoder_forward.1} parent=1 // pred_check_branch
      %1866 = sbr.rel (0) target = $region53
    $region52: #{encoder_forward.1} parent=1 // pred_region
      %1867 = dma.done [#allocation3], 256
    $region53: #{encoder_forward.1} parent=1 // pred_fallthru
      _
    %1868 = vsyncpa [#allocation3], 1

</llo_original>
